<compile_context>
chip_gen: v7x
topology: tpu7x:2x2x1
jax: 0.10.0
libtpu: 0.0.40
codegen_flags: <defaults>
</compile_context>

<pallas_src>
import functools

import jax
import jax.numpy as jnp
from jax.experimental import pallas as pl
from jax.experimental.pallas import tpu as pltpu


def _round_up(x, m):
    return ((x + m - 1) // m) * m


def _scorer_kernel(t1_ref, l1_ref, atok_ref, alab_ref,
                   w1m_ref, w2_ref, b2_ref, o_ref, *, num_chunks):
    """One (TL, TC) tile of the scorer.

    t1_ref   : (TL, H)        bf16  token bilinear half
    l1_ref   : (TC, H)        bf16  label bilinear half
    atok_ref : (TL, FH)       bf16  precomputed token-linear contribution (+ b1)
    alab_ref : (TC, FH)       bf16  precomputed label-linear contribution
    w1m_ref  : (H, FH)        bf16  bilinear slice of out_mlp[0] weight
    w2_ref   : (FH, 3)        bf16  out_mlp[3] weight
    b2_ref   : (1, 3)         f32   out_mlp[3] bias
    o_ref    : (3, 1, TL, TC) f32   channel-major output tile
    """
    TL, H = t1_ref.shape
    TC = l1_ref.shape[0]
    FH = atok_ref.shape[1]
    M = TL * TC
    TF = FH // num_chunks

    t1 = t1_ref[...]                                        # (TL, H) bf16
    l1 = l1_ref[...]                                        # (TC, H) bf16
    # bilinear term: prod[(l, c), :] = t1[l, :] * l1[c, :]
    prod = (t1[:, None, :] * l1[None, :, :]).reshape(M, H)  # bf16

    # FH processed in chunks so the (M, TF) intermediates stay small; the
    # accumulation over chunks is exact (f32).
    acc = jnp.zeros((M, 3), jnp.float32)
    for c in range(num_chunks):
        f0 = c * TF
        w1m_c = w1m_ref[:, f0:f0 + TF]                           # (H, TF) bf16
        atok_c = atok_ref[:, f0:f0 + TF].astype(jnp.float32)     # (TL, TF)
        alab_c = alab_ref[:, f0:f0 + TF].astype(jnp.float32)     # (TC, TF)
        w2_c = w2_ref[f0:f0 + TF, :]                             # (TF, 3) bf16

        h = jnp.dot(prod, w1m_c, preferred_element_type=jnp.float32)  # (M, TF)
        h = h.reshape(TL, TC, TF) + atok_c[:, None, :] + alab_c[None, :, :]
        h = jnp.maximum(h, 0.0)
        # (FH, 3) GEMM kept on the MXU: ~25% of the first GEMM's pushes,
        # cheaper than a 3-pass VPU multiply+reduce.
        acc = acc + jnp.dot(h.reshape(M, TF).astype(jnp.bfloat16), w2_c,
                            preferred_element_type=jnp.float32)

    acc = acc + b2_ref[...]                                  # (M, 3) f32
    # tiny (M, 3) -> (3, TL, TC) relayout: per-channel mask + reduce over the
    # 3-wide minor axis, so each stored plane is lane-dense in TC.
    res = acc.reshape(TL, TC, 3)
    ch_idx = jax.lax.broadcasted_iota(jnp.int32, (TL, TC, 3), 2)
    for o in range(3):
        o_ref[o, 0, :, :] = jnp.sum(jnp.where(ch_idx == o, res, 0.0), axis=-1)


def _num_fh_chunks(FH, M):
    """Chunk FH so the (M, TF) f32 intermediate stays <= ~4 MiB."""
    target = max(128, min(1024, ((1 << 20) // max(M, 1)) // 128 * 128))
    if FH <= target:
        return 1
    for tf in range(target, 127, -128):
        if FH % tf == 0:
            return FH // tf
    return 1


def _vmem_limit_bytes():
    # Per-generation scoped-VMEM limit: ~25% headroom on v7x (64 MiB physical),
    # capped at 96 MiB on v5e/v6e (128 MiB physical).
    try:
        cap = int(pltpu.get_tpu_info().vmem_capacity_bytes)
    except Exception:
        cap = 128 * 1024 * 1024
    return int(min(cap * 3 // 4, 96 * 1024 * 1024))


def scorer_forward(token_rep, label_rep, params):
    """Pallas Scorer forward. Returns (3, B, L, C) float32, matching PyTorch."""
    B, L, H = token_rep.shape
    C = label_rep.shape[1]
    wt, bt, wl, bl, w1, b1, w2, b2 = params
    FH = w1.shape[1]                        # 4H
    f32, bf16 = jnp.float32, jnp.bfloat16

    # split projection weights
    wt0, wt1 = wt[:, :H], wt[:, H:]
    bt0, bt1 = bt[:H], bt[H:]
    wl0, wl1 = wl[:, :H], wl[:, H:]
    bl0, bl1 = bl[:H], bl[H:]
    w1t, w1l, w1m = w1[:H], w1[H:2 * H], w1[2 * H:]

    # fold linear chains offline (exact)
    Wft = wt0 @ w1t
    bft = bt0 @ w1t + b1
    Wfl = wl0 @ w1l
    bfl = bl0 @ w1l

    # token-only / label-only terms, computed once by XLA; streamed as bf16
    t1 = (token_rep @ wt1 + bt1).astype(bf16)        # (B, L, H)
    a_tok = (token_rep @ Wft + bft).astype(bf16)     # (B, L, FH)
    l1 = (label_rep @ wl1 + bl1).astype(bf16)        # (B, C, H)
    a_lab = (label_rep @ Wfl + bfl).astype(bf16)     # (B, C, FH)

    w1m_bf = w1m.astype(bf16)                        # (H, FH)
    w2_bf = w2.astype(bf16)                          # (FH, 3)
    b2_2d = b2.reshape(1, 3).astype(f32)

    # --- tiling -----------------------------------------------------------
    # classes go on the output lane axis: one full-extent class tile when C is
    # small (avoids padding C up to 128); 128-wide class tiles otherwise.
    if _round_up(C, 8) <= 256:
        TC = Cp = _round_up(C, 8)
    else:
        TC = 128
        Cp = _round_up(C, 128)
    # sequence tile: fill the MXU with M = TL*TC ~ 1024 flattened rows, but
    # never exceed the (padded) sequence length (tiny problems -> one tile).
    M_TARGET = 1024
    TL = min(_round_up(L, 8), max(8, _round_up(M_TARGET // TC, 8)))
    Lp = _round_up(L, TL)
    # keep >= 2 grid tiles so both TensorCores are used on v7x megacore
    if B * (Lp // TL) * (Cp // TC) < 2 and TL >= 16:
        TL = max(8, _round_up(TL // 2, 8))
        Lp = _round_up(L, TL)

    num_chunks = _num_fh_chunks(FH, TL * TC)

    def pad_axis(x, axis, target):
        extra = target - x.shape[axis]
        if extra == 0:
            return x
        widths = [(0, 0)] * x.ndim
        widths[axis] = (0, extra)
        return jnp.pad(x, widths)

    t1 = pad_axis(t1, 1, Lp)
    a_tok = pad_axis(a_tok, 1, Lp)
    l1 = pad_axis(l1, 1, Cp)
    a_lab = pad_axis(a_lab, 1, Cp)

    grid = (B, Lp // TL, Cp // TC)
    kernel = functools.partial(_scorer_kernel, num_chunks=num_chunks)

    # NOTE: w1m/w2/b2 have constant index maps (fetched once); they could also
    # be marked pipeline_mode=pl.Buffered(1) to drop the second buffer copy.
    out = pl.pallas_call(
        kernel,
        out_shape=jax.ShapeDtypeStruct((3, B, Lp, Cp), f32),
        grid=grid,
        in_specs=[
            pl.BlockSpec((None, TL, H), lambda b, li, ci: (b, li, 0)),    # t1
            pl.BlockSpec((None, TC, H), lambda b, li, ci: (b, ci, 0)),    # l1
            pl.BlockSpec((None, TL, FH), lambda b, li, ci: (b, li, 0)),   # a_tok
            pl.BlockSpec((None, TC, FH), lambda b, li, ci: (b, ci, 0)),   # a_lab
            pl.BlockSpec((H, FH), lambda b, li, ci: (0, 0)),              # w1m
            pl.BlockSpec((FH, 3), lambda b, li, ci: (0, 0)),              # w2
            pl.BlockSpec((1, 3), lambda b, li, ci: (0, 0)),               # b2
        ],
        # channel-major output tile (classes on the lane axis); no XLA permute.
        out_specs=pl.BlockSpec((3, 1, TL, TC), lambda b, li, ci: (0, b, li, ci)),
        compiler_params=pltpu.CompilerParams(
            dimension_semantics=("parallel", "parallel", "parallel"),
            vmem_limit_bytes=_vmem_limit_bytes()),
    )(t1, l1, a_tok, a_lab, w1m_bf, w2_bf, b2_2d)

    return out[:, :, :L, :C]            # strip seq/class padding; (3, B, L, C)


def scorer_ref(token_rep, label_rep, params):
    """Pure-JAX f32 reference mirroring the PyTorch forward (eval mode)."""
    wt, bt, wl, bl, w1, b1, w2, b2 = params
    B, L, H = token_rep.shape
    C = label_rep.shape[1]
    tp = token_rep @ wt + bt          # (B, L, 2H)
    lp = label_rep @ wl + bl          # (B, C, 2H)
    t0, t1 = tp[..., :H], tp[..., H:]
    l0, l1 = lp[..., :H], lp[..., H:]
    cat = jnp.concatenate([
        jnp.broadcast_to(t0[:, :, None, :], (B, L, C, H)),
        jnp.broadcast_to(l0[:, None, :, :], (B, L, C, H)),
        t1[:, :, None, :] * l1[:, None, :, :],
    ], axis=-1)                       # (B, L, C, 3H)
    h = jnp.maximum(cat @ w1 + b1, 0.0)
    out = h @ w2 + b2                 # (B, L, C, 3)
    return jnp.transpose(out, (3, 0, 1, 2))


def init_params(key, H):
    """Deterministic synthetic params, PyTorch-Linear-style uniform init.
    Weights stored as (in_features, out_features) so forward is x @ W + b."""
    def lin(k, fan_in, fan_out):
        kw, kb = jax.random.split(k)
        bound = 1.0 / float(fan_in) ** 0.5
        w = jax.random.uniform(kw, (fan_in, fan_out), jnp.float32, -bound, bound)
        b = jax.random.uniform(kb, (fan_out,), jnp.float32, -bound, bound)
        return w, b

    ks = jax.random.split(key, 4)
    wt, bt = lin(ks[0], H, 2 * H)       # proj_token
    wl, bl = lin(ks[1], H, 2 * H)       # proj_label
    w1, b1 = lin(ks[2], 3 * H, 4 * H)   # out_mlp[0]
    w2, b2 = lin(ks[3], 4 * H, 3)       # out_mlp[3]
    return wt, bt, wl, bl, w1, b1, w2, b2


if __name__ == "__main__":
    B, L, C, H = 2, 16, 8, 64
    key = jax.random.PRNGKey(0)
    k_tok, k_lab, k_par = jax.random.split(key, 3)

    token_rep = jax.random.normal(k_tok, (B, L, H), jnp.float32)
    label_rep = jax.random.normal(k_lab, (B, C, H), jnp.float32)
    params = init_params(k_par, H)

    fwd = jax.jit(scorer_forward)
    out = jax.block_until_ready(fwd(token_rep, label_rep, params))

    ref = scorer_ref(token_rep, label_rep, params)
    assert out.shape == (3, B, L, C), out.shape
    # bf16 matmul operands / streamed activations (f32 accumulation) ->
    # loosened tolerance vs the f32 reference
    assert jnp.allclose(out, ref, rtol=2e-2, atol=2e-2), \
        float(jnp.max(jnp.abs(out - ref)))
    print("KERNEL_OK")
</pallas_src>

<mosaic_0001>
module attributes {stable_mosaic.version = 11 : i64} {
  func.func @_scorer_kernel(%arg0: i32, %arg1: i32, %arg2: i32, %arg3: memref<1x16x64xbf16, #tpu.memory_space<vmem>>, %arg4: memref<1x8x64xbf16, #tpu.memory_space<vmem>>, %arg5: memref<1x16x256xbf16, #tpu.memory_space<vmem>>, %arg6: memref<1x8x256xbf16, #tpu.memory_space<vmem>>, %arg7: memref<64x256xbf16, #tpu.memory_space<vmem>>, %arg8: memref<256x3xbf16, #tpu.memory_space<vmem>>, %arg9: memref<1x3xf32, #tpu.memory_space<vmem>>, %arg10: memref<3x1x16x8xf32, #tpu.memory_space<vmem>>) attributes {dimension_semantics = [#tpu.dimension_semantics<parallel>, #tpu.dimension_semantics<parallel>, #tpu.dimension_semantics<parallel>], iteration_bounds = array<i64: 2, 1, 1>, scalar_prefetch = 0 : i64, scratch_operands = 0 : i64, tpu.core_type = #tpu.core_type<tc>, window_params = [{transform_indices = @transform_0, window_bounds = array<i64: 1, 16, 64>}, {transform_indices = @transform_1, window_bounds = array<i64: 1, 8, 64>}, {transform_indices = @transform_2, window_bounds = array<i64: 1, 16, 256>}, {transform_indices = @transform_3, window_bounds = array<i64: 1, 8, 256>}, {pipeline_mode = #tpu.pipeline_mode<synchronous>, transform_indices = @transform_4, window_bounds = array<i64: 64, 256>}, {pipeline_mode = #tpu.pipeline_mode<synchronous>, transform_indices = @transform_5, window_bounds = array<i64: 256, 3>}, {pipeline_mode = #tpu.pipeline_mode<synchronous>, transform_indices = @transform_6, window_bounds = array<i64: 1, 3>}, {transform_indices = @transform_7, window_bounds = array<i64: 3, 1, 16, 8>}]} {
    %c0 = arith.constant 0 : index
    %c0_0 = arith.constant 0 : index
    %c0_1 = arith.constant 0 : index
    %0 = vector.load %arg3[%c0, %c0_0, %c0_1] : memref<1x16x64xbf16, #tpu.memory_space<vmem>>, vector<1x16x64xbf16>
    %1 = vector.shape_cast %0 : vector<1x16x64xbf16> to vector<16x64xbf16>
    %c0_2 = arith.constant 0 : index
    %c0_3 = arith.constant 0 : index
    %c0_4 = arith.constant 0 : index
    %2 = vector.load %arg4[%c0_2, %c0_3, %c0_4] : memref<1x8x64xbf16, #tpu.memory_space<vmem>>, vector<1x8x64xbf16>
    %3 = vector.shape_cast %2 : vector<1x8x64xbf16> to vector<8x64xbf16>
    %4 = vector.shape_cast %1 : vector<16x64xbf16> to vector<16x1x64xbf16>
    %5 = vector.shape_cast %3 : vector<8x64xbf16> to vector<1x8x64xbf16>
    %6 = vector.broadcast %4 : vector<16x1x64xbf16> to vector<16x8x64xbf16>
    %7 = vector.broadcast %5 : vector<1x8x64xbf16> to vector<16x8x64xbf16>
    %8 = arith.mulf %6, %7 : vector<16x8x64xbf16>
    %9 = vector.shape_cast %8 : vector<16x8x64xbf16> to vector<128x64xbf16>
    %cst = arith.constant 0.000000e+00 : f32
    %10 = vector.broadcast %cst : f32 to vector<128x3xf32>
    %c0_5 = arith.constant 0 : index
    %c0_6 = arith.constant 0 : index
    %11 = vector.load %arg7[%c0_5, %c0_6] : memref<64x256xbf16, #tpu.memory_space<vmem>>, vector<64x256xbf16>
    %c0_7 = arith.constant 0 : index
    %c0_8 = arith.constant 0 : index
    %c0_9 = arith.constant 0 : index
    %12 = vector.load %arg5[%c0_7, %c0_8, %c0_9] : memref<1x16x256xbf16, #tpu.memory_space<vmem>>, vector<1x16x256xbf16>
    %13 = vector.shape_cast %12 : vector<1x16x256xbf16> to vector<16x256xbf16>
    %14 = arith.extf %13 : vector<16x256xbf16> to vector<16x256xf32>
    %c0_10 = arith.constant 0 : index
    %c0_11 = arith.constant 0 : index
    %c0_12 = arith.constant 0 : index
    %15 = vector.load %arg6[%c0_10, %c0_11, %c0_12] : memref<1x8x256xbf16, #tpu.memory_space<vmem>>, vector<1x8x256xbf16>
    %16 = vector.shape_cast %15 : vector<1x8x256xbf16> to vector<8x256xbf16>
    %17 = arith.extf %16 : vector<8x256xbf16> to vector<8x256xf32>
    %c0_13 = arith.constant 0 : index
    %c0_14 = arith.constant 0 : index
    %18 = vector.load %arg8[%c0_13, %c0_14] : memref<256x3xbf16, #tpu.memory_space<vmem>>, vector<256x3xbf16>
    %cst_15 = arith.constant dense<0.000000e+00> : vector<128x256xf32>
    %19 = tpu.matmul %9, %11, %cst_15 {dimension_numbers = #tpu.dot_dimension_numbers<[1], [0], [0], [1], [0, 0, 1, 1], [], []>} : vector<128x64xbf16>, vector<64x256xbf16>, vector<128x256xf32> -> vector<128x256xf32>
    %20 = vector.shape_cast %19 : vector<128x256xf32> to vector<16x8x256xf32>
    %21 = vector.shape_cast %14 : vector<16x256xf32> to vector<16x1x256xf32>
    %22 = vector.broadcast %21 : vector<16x1x256xf32> to vector<16x8x256xf32>
    %23 = arith.addf %20, %22 : vector<16x8x256xf32>
    %24 = vector.shape_cast %17 : vector<8x256xf32> to vector<1x8x256xf32>
    %25 = vector.broadcast %24 : vector<1x8x256xf32> to vector<16x8x256xf32>
    %26 = arith.addf %23, %25 : vector<16x8x256xf32>
    %cst_16 = arith.constant 0.000000e+00 : f32
    %27 = vector.broadcast %cst_16 : f32 to vector<16x8x256xf32>
    %28 = arith.maximumf %26, %27 : vector<16x8x256xf32>
    %29 = vector.shape_cast %28 : vector<16x8x256xf32> to vector<128x256xf32>
    %30 = arith.truncf %29 : vector<128x256xf32> to vector<128x256xbf16>
    %cst_17 = arith.constant dense<0.000000e+00> : vector<128x3xf32>
    %31 = tpu.matmul %30, %18, %cst_17 {dimension_numbers = #tpu.dot_dimension_numbers<[1], [0], [0], [1], [0, 0, 1, 1], [], []>} : vector<128x256xbf16>, vector<256x3xbf16>, vector<128x3xf32> -> vector<128x3xf32>
    %32 = arith.addf %10, %31 : vector<128x3xf32>
    %c0_18 = arith.constant 0 : index
    %c0_19 = arith.constant 0 : index
    %33 = vector.load %arg9[%c0_18, %c0_19] : memref<1x3xf32, #tpu.memory_space<vmem>>, vector<1x3xf32>
    %34 = vector.broadcast %33 : vector<1x3xf32> to vector<128x3xf32>
    %35 = arith.addf %32, %34 : vector<128x3xf32>
    %36 = vector.shape_cast %35 : vector<128x3xf32> to vector<16x8x3xf32>
    %37 = tpu.iota {dimensions = array<i32: 2>} : vector<16x8x3xi32>
    %c0_i32 = arith.constant 0 : i32
    %38 = vector.broadcast %c0_i32 : i32 to vector<16x8x3xi32>
    %39 = arith.cmpi eq, %37, %38 : vector<16x8x3xi32>
    %cst_20 = arith.constant 0.000000e+00 : f32
    %40 = vector.broadcast %cst_20 : f32 to vector<16x8x3xf32>
    %41 = arith.select %39, %36, %40 : vector<16x8x3xi1>, vector<16x8x3xf32>
    %cst_21 = arith.constant dense<0.000000e+00> : vector<16x8xf32>
    %42 = vector.multi_reduction <add>, %41, %cst_21 [2] : vector<16x8x3xf32> to vector<16x8xf32>
    %c0_22 = arith.constant 0 : index
    %c0_23 = arith.constant 0 : index
    %c0_24 = arith.constant 0 : index
    %c0_25 = arith.constant 0 : index
    %43 = vector.load %arg10[%c0_22, %c0_23, %c0_24, %c0_25] : memref<3x1x16x8xf32, #tpu.memory_space<vmem>>, vector<1x1x16x8xf32>
    %44 = vector.shape_cast %43 : vector<1x1x16x8xf32> to vector<16x8xf32>
    %45 = vector.shape_cast %42 : vector<16x8xf32> to vector<1x1x16x8xf32>
    tpu.vector_store %arg10[%c0_22, %c0_23, %c0_24, %c0_25], %45 {strides = array<i32>} : memref<3x1x16x8xf32, #tpu.memory_space<vmem>>, vector<1x1x16x8xf32>,
    %c1_i32 = arith.constant 1 : i32
    %46 = vector.broadcast %c1_i32 : i32 to vector<16x8x3xi32>
    %47 = arith.cmpi eq, %37, %46 : vector<16x8x3xi32>
    %cst_26 = arith.constant 0.000000e+00 : f32
    %48 = vector.broadcast %cst_26 : f32 to vector<16x8x3xf32>
    %49 = arith.select %47, %36, %48 : vector<16x8x3xi1>, vector<16x8x3xf32>
    %cst_27 = arith.constant dense<0.000000e+00> : vector<16x8xf32>
    %50 = vector.multi_reduction <add>, %49, %cst_27 [2] : vector<16x8x3xf32> to vector<16x8xf32>
    %c1 = arith.constant 1 : index
    %c0_28 = arith.constant 0 : index
    %c0_29 = arith.constant 0 : index
    %c0_30 = arith.constant 0 : index
    %51 = vector.load %arg10[%c1, %c0_28, %c0_29, %c0_30] : memref<3x1x16x8xf32, #tpu.memory_space<vmem>>, vector<1x1x16x8xf32>
    %52 = vector.shape_cast %51 : vector<1x1x16x8xf32> to vector<16x8xf32>
    %53 = vector.shape_cast %50 : vector<16x8xf32> to vector<1x1x16x8xf32>
    tpu.vector_store %arg10[%c1, %c0_28, %c0_29, %c0_30], %53 {strides = array<i32>} : memref<3x1x16x8xf32, #tpu.memory_space<vmem>>, vector<1x1x16x8xf32>,
    %c2_i32 = arith.constant 2 : i32
    %54 = vector.broadcast %c2_i32 : i32 to vector<16x8x3xi32>
    %55 = arith.cmpi eq, %37, %54 : vector<16x8x3xi32>
    %cst_31 = arith.constant 0.000000e+00 : f32
    %56 = vector.broadcast %cst_31 : f32 to vector<16x8x3xf32>
    %57 = arith.select %55, %36, %56 : vector<16x8x3xi1>, vector<16x8x3xf32>
    %cst_32 = arith.constant dense<0.000000e+00> : vector<16x8xf32>
    %58 = vector.multi_reduction <add>, %57, %cst_32 [2] : vector<16x8x3xf32> to vector<16x8xf32>
    %c2 = arith.constant 2 : index
    %c0_33 = arith.constant 0 : index
    %c0_34 = arith.constant 0 : index
    %c0_35 = arith.constant 0 : index
    %59 = vector.load %arg10[%c2, %c0_33, %c0_34, %c0_35] : memref<3x1x16x8xf32, #tpu.memory_space<vmem>>, vector<1x1x16x8xf32>
    %60 = vector.shape_cast %59 : vector<1x1x16x8xf32> to vector<16x8xf32>
    %61 = vector.shape_cast %58 : vector<16x8xf32> to vector<1x1x16x8xf32>
    tpu.vector_store %arg10[%c2, %c0_33, %c0_34, %c0_35], %61 {strides = array<i32>} : memref<3x1x16x8xf32, #tpu.memory_space<vmem>>, vector<1x1x16x8xf32>,
    return
  }
  func.func @transform_0(%arg0: i32, %arg1: i32, %arg2: i32) -> (i32, i32, i32) {
    %c0_i32 = arith.constant 0 : i32
    %c0_i32_0 = arith.constant 0 : i32
    return %arg0, %arg1, %c0_i32 : i32, i32, i32
  }
  func.func @transform_1(%arg0: i32, %arg1: i32, %arg2: i32) -> (i32, i32, i32) {
    %c0_i32 = arith.constant 0 : i32
    %c0_i32_0 = arith.constant 0 : i32
    return %arg0, %arg2, %c0_i32 : i32, i32, i32
  }
  func.func @transform_2(%arg0: i32, %arg1: i32, %arg2: i32) -> (i32, i32, i32) {
    %c0_i32 = arith.constant 0 : i32
    %c0_i32_0 = arith.constant 0 : i32
    return %arg0, %arg1, %c0_i32 : i32, i32, i32
  }
  func.func @transform_3(%arg0: i32, %arg1: i32, %arg2: i32) -> (i32, i32, i32) {
    %c0_i32 = arith.constant 0 : i32
    %c0_i32_0 = arith.constant 0 : i32
    return %arg0, %arg2, %c0_i32 : i32, i32, i32
  }
  func.func @transform_4(%arg0: i32, %arg1: i32, %arg2: i32) -> (i32, i32) {
    %c0_i32 = arith.constant 0 : i32
    %c0_i32_0 = arith.constant 0 : i32
    %c0_i32_1 = arith.constant 0 : i32
    return %c0_i32, %c0_i32_0 : i32, i32
  }
  func.func @transform_5(%arg0: i32, %arg1: i32, %arg2: i32) -> (i32, i32) {
    %c0_i32 = arith.constant 0 : i32
    %c0_i32_0 = arith.constant 0 : i32
    %c0_i32_1 = arith.constant 0 : i32
    return %c0_i32, %c0_i32_0 : i32, i32
  }
  func.func @transform_6(%arg0: i32, %arg1: i32, %arg2: i32) -> (i32, i32) {
    %c0_i32 = arith.constant 0 : i32
    %c0_i32_0 = arith.constant 0 : i32
    %c0_i32_1 = arith.constant 0 : i32
    return %c0_i32, %c0_i32_0 : i32, i32
  }
  func.func @transform_7(%arg0: i32, %arg1: i32, %arg2: i32) -> (i32, i32, i32, i32) {
    %c0_i32 = arith.constant 0 : i32
    %c0_i32_0 = arith.constant 0 : i32
    return %c0_i32, %arg0, %arg1, %arg2 : i32, i32, i32, i32
  }
}

</mosaic_0001>

<llo_original>
// kernel: scorer_forward.1
$region0: #{scorer_forward.1}
  #allocation0 [shape = 'u32[]', space=smem, size = 0x4, offset = 0x4, fixed_abs, tag = 'smem constant byte address 0x4 - core index']
  #allocation1 [shape = 'u32[144,128]{1,0:T(1,128)}', space=vmem, size = 0x12000, scoped, tag = 'internal scratch']
  #allocation15 [shape = 's32[]', space=sflag, size = 0x4, offset = 0, fixed_abs, tag = 'sflag constant byte address 0x0 - dummy sync flag']
  %s0 = inlined_call_operand.hbm [shape: bf16[2,16,64], index: 0, kind: input, shape index: {}]
  %s1 = inlined_call_operand.hbm [shape: bf16[2,8,64], index: 1, kind: input, shape index: {}]
  %s2 = inlined_call_operand.hbm [shape: bf16[2,16,256], index: 2, kind: input, shape index: {}]
  %s3 = inlined_call_operand.hbm [shape: bf16[2,8,256], index: 3, kind: input, shape index: {}]
  %s4 = inlined_call_operand.hbm [shape: bf16[64,256], index: 4, kind: input, shape index: {}]
  %s5 = inlined_call_operand.hbm [shape: bf16[256,3], index: 5, kind: input, shape index: {}]
  %s6 = inlined_call_operand.hbm [shape: f32[1,3], index: 6, kind: input, shape index: {}]
  %s7 = inlined_call_operand.hbm [shape: f32[3,2,16,8], index: 7, kind: output, shape index: {}]
  %s8 = sld [smem:[#allocation0]]
  $region89: #{scorer_forward.1} parent=0
    _
  %s10 = ssub.s32 1, %s8
  %s11 = scalar_select 0, %s10, %s8
  $region1: #{scorer_forward.1} parent=0
    #allocation2 [shape = 'u8[8192]{0}', space=vmem, size = 0x2000, scoped, tag = 'input window, operand 0']
    #allocation3 [shape = 's32[2]{0}', space=sflag, size = 0x8, scoped, tag = 'scoped memory for scorer_forward.1']
    #allocation4 [shape = 's32[2]{0}', space=sflag, size = 0x8, scoped, tag = 'scoped memory for scorer_forward.1']
    #allocation5 [shape = 'u8[4096]{0}', space=vmem, size = 0x1000, scoped, tag = 'input window, operand 1']
    #allocation6 [shape = 's32[2]{0}', space=sflag, size = 0x8, scoped, tag = 'scoped memory for scorer_forward.1']
    #allocation7 [shape = 'u8[16384]{0}', space=vmem, size = 0x4000, scoped, tag = 'input window, operand 2']
    #allocation8 [shape = 'u8[8192]{0}', space=vmem, size = 0x2000, scoped, tag = 'input window, operand 3']
    #allocation9 [shape = 's32[2]{0}', space=sflag, size = 0x8, scoped, tag = 'scoped memory for scorer_forward.1']
    #allocation10 [shape = 'u8[32768]{0}', space=vmem, size = 0x8000, scoped, tag = 'input window, operand 4, single buffered']
    #allocation11 [shape = 'u8[65536]{0}', space=vmem, size = 0x10000, scoped, tag = 'input window, operand 5, single buffered']
    #allocation12 [shape = 's32[1]{0}', space=sflag, size = 0x4, scoped, tag = 'scoped memory for scorer_forward.1']
    #allocation13 [shape = 'u8[512]{0}', space=vmem, size = 0x400, scoped, tag = 'input window, operand 6, single buffered']
    #allocation14 [shape = 'u8[49152]{0}', space=vmem, size = 0xc000, scoped, tag = 'output window, operand 0']
    %12 = vsyncpa [#allocation3], 0
    %s13 = scalar_lea.sflag [#allocation3], 1
    %14 = vsyncpa %s13, 0
    %15 = vsyncpa [#allocation6], 0
    %s16 = scalar_lea.sflag [#allocation6], 1
    %17 = vsyncpa %s16, 0
    %18 = vsyncpa [#allocation9], 0
    %s19 = scalar_lea.sflag [#allocation9], 1
    %20 = vsyncpa %s19, 0
    %21 = vsyncpa [#allocation12], 0
    %22 = vsyncpa [#allocation4], 0
    %s23 = scalar_lea.sflag [#allocation4], 1
    %24 = vsyncpa %s23, 0
    loop: start=0, step=1, limit=4
    $region2: #{scorer_forward.1} parent=1 // loop_pre_header
      _
    $region3: #{scorer_forward.1} parent=1 // loop_header
      %s26 = sphi 0, %s30
      %p27 = scmp.ge.s32.totalorder %s26, 4
      %s33 = sphi 0, %s52
      %s34 = sphi 0, %s48
      %s35 = sphi 0, %s44
      %s36 = sphi 0, %s33
      %s37 = sphi 0, %s34
      %s38 = sphi 0, %s35
      %s39 = sphi 0, %s36
      %s40 = sphi 0, %s37
      %s41 = sphi 0, %s38
      %s57 = sphi 0, %s59
      %s60 = sphi 0, %s57
      %s61 = sphi 0, %s60
      %s77 = sphi 0, %s61
      %s85 = sphi 0, %s87
      %s88 = sphi 0, %s85
      %s89 = sphi 0, %s88
      %s105 = sphi 0, %s89
      %s113 = sphi 0, %s115
      %s116 = sphi 0, %s113
      %s117 = sphi 0, %s116
      %s133 = sphi 0, %s117
      %s141 = sphi 0, %s143
      %s144 = sphi 0, %s141
      %s145 = sphi 0, %s144
      %s161 = sphi 0, %s145
      %s165 = sphi 0, %s165
      %s167 = sphi 0, %s165
      %s168 = sphi 0, %s167
      %s182 = sphi 0, %s168
      %s186 = sphi 0, %s186
      %s188 = sphi 0, %s186
      %s189 = sphi 0, %s188
      %s203 = sphi 0, %s189
      %s207 = sphi 0, %s207
      %s209 = sphi 0, %s207
      %s210 = sphi 0, %s209
      %s224 = sphi 0, %s210
      %s234 = sphi 0, %s236
      %s237 = sphi 0, %s234
      %s238 = sphi 0, %s237
      %s254 = sphi 0, %s238
    $region4: #{scorer_forward.1} parent=1 // loop_header_branch
      %29 = sbr.rel (%p27) target = $region8
    $region5: #{scorer_forward.1} parent=1 // loop_body
      %s31 = ssub.s32 %s26, 1
      %s32 = ssub.s32 %s26, 2
      %s42 = sadd.s32 1, %s35
      %p43 = scmp.ge.s32.totalorder %s42, 1
      %s44 = scalar_select %p43, 0, %s42
      %s45 = sadd.s32 1, %s34
      %s46 = scalar_select %p43, %s45, %s34
      %p47 = scmp.ge.s32.totalorder %s46, 1
      %s48 = scalar_select %p47, 0, %s46
      %s49 = sadd.s32 1, %s33
      %s50 = scalar_select %p47, %s49, %s33
      %p51 = scmp.ge.s32.totalorder %s50, 2
      %s52 = scalar_select %p51, 0, %s50
      %s53 = ssub.s32 %s33, %s52
      %s54 = ssub.s32 %s34, %s48
      %s55 = sor.u32 %s53, %s54
      %p56 = scmp.eq.s32.totalorder %s55, 0
      %s58 = sadd.s32 %s57, 1
      %s59 = scalar_select %p56, %s57, %s58
      %p62 = pneg %p56
      %p63 = scmp.eq.s32.totalorder %s26, 1
      %p64 = por %p62, %p63
      %p65 = scmp.ne.s32.totalorder %s57, %s60
      %p66 = scmp.eq.s32.totalorder %s26, 0
      %p67 = por %p65, %p66
      %p68 = scmp.ne.s32.totalorder %s57, %s60
      %p69 = scmp.eq.s32.totalorder %s31, 1
      %p70 = por %p68, %p69
      %p71 = scmp.ne.s32.totalorder %s60, %s61
      %p72 = scmp.eq.s32.totalorder %s31, 0
      %p73 = por %p71, %p72
      %p74 = scmp.ne.s32.totalorder %s60, %s61
      %p75 = scmp.eq.s32.totalorder %s32, 1
      %p76 = por %p74, %p75
      %p78 = scmp.ne.s32.totalorder %s61, %s77
      %p79 = scmp.eq.s32.totalorder %s32, 0
      %p80 = por %p78, %p79
      %s81 = ssub.s32 %s33, %s52
      %s82 = ssub.s32 %s35, %s44
      %s83 = sor.u32 %s81, %s82
      %p84 = scmp.eq.s32.totalorder %s83, 0
      %s86 = sadd.s32 %s85, 1
      %s87 = scalar_select %p84, %s85, %s86
      %p90 = pneg %p84
      %p91 = scmp.eq.s32.totalorder %s26, 1
      %p92 = por %p90, %p91
      %p93 = scmp.ne.s32.totalorder %s85, %s88
      %p94 = scmp.eq.s32.totalorder %s26, 0
      %p95 = por %p93, %p94
      %p96 = scmp.ne.s32.totalorder %s85, %s88
      %p97 = scmp.eq.s32.totalorder %s31, 1
      %p98 = por %p96, %p97
      %p99 = scmp.ne.s32.totalorder %s88, %s89
      %p100 = scmp.eq.s32.totalorder %s31, 0
      %p101 = por %p99, %p100
      %p102 = scmp.ne.s32.totalorder %s88, %s89
      %p103 = scmp.eq.s32.totalorder %s32, 1
      %p104 = por %p102, %p103
      %p106 = scmp.ne.s32.totalorder %s89, %s105
      %p107 = scmp.eq.s32.totalorder %s32, 0
      %p108 = por %p106, %p107
      %s109 = ssub.s32 %s33, %s52
      %s110 = ssub.s32 %s34, %s48
      %s111 = sor.u32 %s109, %s110
      %p112 = scmp.eq.s32.totalorder %s111, 0
      %s114 = sadd.s32 %s113, 1
      %s115 = scalar_select %p112, %s113, %s114
      %p118 = pneg %p112
      %p119 = scmp.eq.s32.totalorder %s26, 1
      %p120 = por %p118, %p119
      %p121 = scmp.ne.s32.totalorder %s113, %s116
      %p122 = scmp.eq.s32.totalorder %s26, 0
      %p123 = por %p121, %p122
      %p124 = scmp.ne.s32.totalorder %s113, %s116
      %p125 = scmp.eq.s32.totalorder %s31, 1
      %p126 = por %p124, %p125
      %p127 = scmp.ne.s32.totalorder %s116, %s117
      %p128 = scmp.eq.s32.totalorder %s31, 0
      %p129 = por %p127, %p128
      %p130 = scmp.ne.s32.totalorder %s116, %s117
      %p131 = scmp.eq.s32.totalorder %s32, 1
      %p132 = por %p130, %p131
      %p134 = scmp.ne.s32.totalorder %s117, %s133
      %p135 = scmp.eq.s32.totalorder %s32, 0
      %p136 = por %p134, %p135
      %s137 = ssub.s32 %s33, %s52
      %s138 = ssub.s32 %s35, %s44
      %s139 = sor.u32 %s137, %s138
      %p140 = scmp.eq.s32.totalorder %s139, 0
      %s142 = sadd.s32 %s141, 1
      %s143 = scalar_select %p140, %s141, %s142
      %p146 = pneg %p140
      %p147 = scmp.eq.s32.totalorder %s26, 1
      %p148 = por %p146, %p147
      %p149 = scmp.ne.s32.totalorder %s141, %s144
      %p150 = scmp.eq.s32.totalorder %s26, 0
      %p151 = por %p149, %p150
      %p152 = scmp.ne.s32.totalorder %s141, %s144
      %p153 = scmp.eq.s32.totalorder %s31, 1
      %p154 = por %p152, %p153
      %p155 = scmp.ne.s32.totalorder %s144, %s145
      %p156 = scmp.eq.s32.totalorder %s31, 0
      %p157 = por %p155, %p156
      %p158 = scmp.ne.s32.totalorder %s144, %s145
      %p159 = scmp.eq.s32.totalorder %s32, 1
      %p160 = por %p158, %p159
      %p162 = scmp.ne.s32.totalorder %s145, %s161
      %p163 = scmp.eq.s32.totalorder %s32, 0
      %p164 = por %p162, %p163
      %s166 = sadd.s32 %s165, 1
      %p169 = scmp.eq.s32.totalorder %s26, 1
      %p170 = scmp.ne.s32.totalorder %s165, %s167
      %p171 = scmp.eq.s32.totalorder %s26, 0
      %p172 = por %p170, %p171
      %p173 = scmp.ne.s32.totalorder %s165, %s167
      %p174 = scmp.eq.s32.totalorder %s31, 1
      %p175 = por %p173, %p174
      %p176 = scmp.ne.s32.totalorder %s167, %s168
      %p177 = scmp.eq.s32.totalorder %s31, 0
      %p178 = por %p176, %p177
      %p179 = scmp.ne.s32.totalorder %s167, %s168
      %p180 = scmp.eq.s32.totalorder %s32, 1
      %p181 = por %p179, %p180
      %p183 = scmp.ne.s32.totalorder %s168, %s182
      %p184 = scmp.eq.s32.totalorder %s32, 0
      %p185 = por %p183, %p184
      %s187 = sadd.s32 %s186, 1
      %p190 = scmp.eq.s32.totalorder %s26, 1
      %p191 = scmp.ne.s32.totalorder %s186, %s188
      %p192 = scmp.eq.s32.totalorder %s26, 0
      %p193 = por %p191, %p192
      %p194 = scmp.ne.s32.totalorder %s186, %s188
      %p195 = scmp.eq.s32.totalorder %s31, 1
      %p196 = por %p194, %p195
      %p197 = scmp.ne.s32.totalorder %s188, %s189
      %p198 = scmp.eq.s32.totalorder %s31, 0
      %p199 = por %p197, %p198
      %p200 = scmp.ne.s32.totalorder %s188, %s189
      %p201 = scmp.eq.s32.totalorder %s32, 1
      %p202 = por %p200, %p201
      %p204 = scmp.ne.s32.totalorder %s189, %s203
      %p205 = scmp.eq.s32.totalorder %s32, 0
      %p206 = por %p204, %p205
      %s208 = sadd.s32 %s207, 1
      %p211 = scmp.eq.s32.totalorder %s26, 1
      %p212 = scmp.ne.s32.totalorder %s207, %s209
      %p213 = scmp.eq.s32.totalorder %s26, 0
      %p214 = por %p212, %p213
      %p215 = scmp.ne.s32.totalorder %s207, %s209
      %p216 = scmp.eq.s32.totalorder %s31, 1
      %p217 = por %p215, %p216
      %p218 = scmp.ne.s32.totalorder %s209, %s210
      %p219 = scmp.eq.s32.totalorder %s31, 0
      %p220 = por %p218, %p219
      %p221 = scmp.ne.s32.totalorder %s209, %s210
      %p222 = scmp.eq.s32.totalorder %s32, 1
      %p223 = por %p221, %p222
      %p225 = scmp.ne.s32.totalorder %s210, %s224
      %p226 = scmp.eq.s32.totalorder %s32, 0
      %p227 = por %p225, %p226
      %s228 = ssub.s32 %s33, %s52
      %s229 = ssub.s32 %s34, %s48
      %s230 = sor.u32 %s228, %s229
      %s231 = ssub.s32 %s35, %s44
      %s232 = sor.u32 %s230, %s231
      %p233 = scmp.eq.s32.totalorder %s232, 0
      %s235 = sadd.s32 %s234, 1
      %s236 = scalar_select %p233, %s234, %s235
      %p239 = pneg %p233
      %p240 = scmp.eq.s32.totalorder %s26, 1
      %p241 = por %p239, %p240
      %p242 = scmp.ne.s32.totalorder %s234, %s237
      %p243 = scmp.eq.s32.totalorder %s26, 0
      %p244 = por %p242, %p243
      %p245 = scmp.ne.s32.totalorder %s234, %s237
      %p246 = scmp.eq.s32.totalorder %s31, 1
      %p247 = por %p245, %p246
      %p248 = scmp.ne.s32.totalorder %s237, %s238
      %p249 = scmp.eq.s32.totalorder %s31, 0
      %p250 = por %p248, %p249
      %p251 = scmp.ne.s32.totalorder %s237, %s238
      %p252 = scmp.eq.s32.totalorder %s32, 1
      %p253 = por %p251, %p252
      %p255 = scmp.ne.s32.totalorder %s238, %s254
      %p256 = scmp.eq.s32.totalorder %s32, 0
      %p257 = por %p255, %p256
      %p258 = scmp.le.s32.totalorder 1, %s26
      %p259 = scmp.lt.s32.totalorder %s26, 3
      %p260 = pnand %p258, %p259
      %p261 = pneg %p260
      // Predicated region
      $region9: #{scorer_forward.1} parent=5 // pred_check
        _
      $region10: #{scorer_forward.1} parent=5 // pred_check_branch
        %263 = sbr.rel (%p260) target = $region12
      $region11: #{scorer_forward.1} parent=5 // pred_region
        %s264 = ssub.s32 %s26, 1
        // Predicated region
        $region13: #{scorer_forward.1} parent=11 // pred_check
          %p265 = pneg %p178
        $region14: #{scorer_forward.1} parent=11 // pred_check_branch
          %267 = sbr.rel (%p265) target = $region16
        $region15: #{scorer_forward.1} parent=11 // pred_region
          %s269 = ssub.s32 1024, 1024
          %270 = vsyncadd [#allocation9], %s269
          %s271 = sshll.u32 [#allocation10], 4
          %s272 = int_to_ptr.vmem [resolvable:$true] %s271
          %277 = dma.hbm_to_vmem [thread:$0]  %s4, 1024, %s272, [#allocation9], 128, 128, 8
        $region16: #{scorer_forward.1} parent=11 // pred_fallthru
          _
        // Predicated region
        $region17: #{scorer_forward.1} parent=11 // pred_check
          %p278 = pneg %p199
        $region18: #{scorer_forward.1} parent=11 // pred_check_branch
          %280 = sbr.rel (%p278) target = $region20
        $region19: #{scorer_forward.1} parent=11 // pred_region
          %s282 = ssub.s32 2048, 2048
          %283 = vsyncadd [#allocation12], %s282
          %s284 = sshll.u32 [#allocation11], 4
          %s285 = int_to_ptr.vmem [resolvable:$true] %s284
          %290 = dma.hbm_to_vmem [thread:$0]  %s5, 2048, %s285, [#allocation12], 64, 64, 4
        $region20: #{scorer_forward.1} parent=11 // pred_fallthru
          _
        // Predicated region
        $region21: #{scorer_forward.1} parent=11 // pred_check
          %p291 = pneg %p220
        $region22: #{scorer_forward.1} parent=11 // pred_check_branch
          %293 = sbr.rel (%p291) target = $region24
        $region23: #{scorer_forward.1} parent=11 // pred_region
          %s295 = ssub.s32 16, 16
          %296 = vsyncadd [#allocation12], %s295
          %s298 = sshll.u32 [#allocation13], 4
          %s299 = int_to_ptr.vmem [resolvable:$true] %s298
          %301 = dma.hbm_to_vmem [thread:$0]  %s6, 16, %s299, [#allocation12]
        $region24: #{scorer_forward.1} parent=11 // pred_fallthru
          _
      $region12: #{scorer_forward.1} parent=5 // pred_fallthru
        _
      %p302 = scmp.lt.s32.totalorder %s26, 2
      // Predicated region
      $region25: #{scorer_forward.1} parent=5 // pred_check
        %p303 = pneg %p302
      $region26: #{scorer_forward.1} parent=5 // pred_check_branch
        %305 = sbr.rel (%p303) target = $region28
      $region27: #{scorer_forward.1} parent=5 // pred_region
        // Predicated region
        $region29: #{scorer_forward.1} parent=27 // pred_check
          %p306 = pneg %p67
        $region30: #{scorer_forward.1} parent=27 // pred_check_branch
          %308 = sbr.rel (%p306) target = $region32
        $region31: #{scorer_forward.1} parent=27 // pred_region
          %s309 = sand.u32 %s57, 1
          %s310 = scalar_lea.sflag [#allocation3], %s309
          %s311 = sand.u32 %s57, 1
          %s312 = smul.addr %s311, 8
          %s313 = scalar_lea.vmem [#allocation2], %s312
          %s314 = smul.u32 2, %s34
          %s316 = ssub.s32 128, 128
          %317 = vsyncadd %s310, %s316
          %s318 = smul.addr %s33, 2
          %s319 = sadd.s32 %s314, %s318
          %s320 = smul.addr %s319, 64
          %s321 = scalar_lea.hbm %s0, %s320
          %s322 = sshll.u32 %s313, 4
          %s323 = int_to_ptr.vmem [resolvable:$true] %s322
          %328 = dma.hbm_to_vmem [thread:$0]  %s321, 128, %s323, %s310, 64, 64, 4
        $region32: #{scorer_forward.1} parent=27 // pred_fallthru
          _
        // Predicated region
        $region33: #{scorer_forward.1} parent=27 // pred_check
          %p329 = pneg %p95
        $region34: #{scorer_forward.1} parent=27 // pred_check_branch
          %331 = sbr.rel (%p329) target = $region36
        $region35: #{scorer_forward.1} parent=27 // pred_region
          %s332 = sand.u32 %s26, 1
          %s333 = scalar_lea.sflag [#allocation6], %s332
          %s334 = sand.u32 %s85, 1
          %s335 = smul.addr %s334, 4
          %s336 = scalar_lea.vmem [#allocation5], %s335
          %s338 = ssub.s32 64, 64
          %339 = vsyncadd %s333, %s338
          %s340 = sadd.s32 %s35, %s33
          %s341 = smul.addr %s340, 64
          %s342 = scalar_lea.hbm %s1, %s341
          %s344 = sshll.u32 %s336, 4
          %s345 = int_to_ptr.vmem [resolvable:$true] %s344
          %347 = dma.hbm_to_vmem [thread:$0]  %s342, 64, %s345, %s333
        $region36: #{scorer_forward.1} parent=27 // pred_fallthru
          _
        // Predicated region
        $region37: #{scorer_forward.1} parent=27 // pred_check
          %p348 = pneg %p123
        $region38: #{scorer_forward.1} parent=27 // pred_check_branch
          %350 = sbr.rel (%p348) target = $region40
        $region39: #{scorer_forward.1} parent=27 // pred_region
          %s351 = sand.u32 %s26, 1
          %s352 = scalar_lea.sflag [#allocation6], %s351
          %s353 = sand.u32 %s113, 1
          %s354 = smul.addr %s353, 16
          %s355 = scalar_lea.vmem [#allocation7], %s354
          %s356 = smul.u32 2, %s34
          %s358 = ssub.s32 256, 256
          %359 = vsyncadd %s352, %s358
          %s360 = smul.addr %s356, 2
          %s361 = smul.addr %s33, 4
          %s362 = sadd.s32 %s360, %s361
          %s363 = smul.addr %s362, 64
          %s364 = scalar_lea.hbm %s2, %s363
          %s365 = sshll.u32 %s355, 4
          %s366 = int_to_ptr.vmem [resolvable:$true] %s365
          %371 = dma.hbm_to_vmem [thread:$0]  %s364, 256, %s366, %s352, 128, 128, 8
        $region40: #{scorer_forward.1} parent=27 // pred_fallthru
          _
        // Predicated region
        $region41: #{scorer_forward.1} parent=27 // pred_check
          %p372 = pneg %p151
        $region42: #{scorer_forward.1} parent=27 // pred_check_branch
          %374 = sbr.rel (%p372) target = $region44
        $region43: #{scorer_forward.1} parent=27 // pred_region
          %s375 = sand.u32 %s26, 1
          %s376 = scalar_lea.sflag [#allocation9], %s375
          %s377 = sand.u32 %s141, 1
          %s378 = smul.addr %s377, 8
          %s379 = scalar_lea.vmem [#allocation8], %s378
          %s381 = ssub.s32 128, 128
          %382 = vsyncadd %s376, %s381
          %s383 = smul.addr %s35, 2
          %s384 = smul.addr %s33, 2
          %s385 = sadd.s32 %s383, %s384
          %s386 = smul.addr %s385, 64
          %s387 = scalar_lea.hbm %s3, %s386
          %s389 = sshll.u32 %s379, 4
          %s390 = int_to_ptr.vmem [resolvable:$true] %s389
          %392 = dma.hbm_to_vmem [thread:$0]  %s387, 128, %s390, %s376
        $region44: #{scorer_forward.1} parent=27 // pred_fallthru
          _
      $region28: #{scorer_forward.1} parent=5 // pred_fallthru
        _
      %p393 = scmp.le.s32.totalorder 1, %s26
      %p394 = scmp.lt.s32.totalorder %s26, 3
      %p395 = pnand %p393, %p394
      %p396 = pneg %p395
      // Predicated region
      $region45: #{scorer_forward.1} parent=5 // pred_check
        _
      $region46: #{scorer_forward.1} parent=5 // pred_check_branch
        %398 = sbr.rel (%p395) target = $region48
      $region47: #{scorer_forward.1} parent=5 // pred_region
        %s399 = ssub.s32 %s26, 1
        %s400 = sand.u32 %s60, 1
        %s401 = scalar_lea.sflag [#allocation3], %s400
        %s402 = sand.u32 %s60, 1
        %s403 = smul.addr %s402, 8
        %s404 = scalar_lea.vmem [#allocation2], %s403
        // Predicated region
        $region49: #{scorer_forward.1} parent=47 // pred_check
          %p405 = pneg %p73
        $region50: #{scorer_forward.1} parent=47 // pred_check_branch
          %407 = sbr.rel (%p405) target = $region52
        $region51: #{scorer_forward.1} parent=47 // pred_region
          %408 = dma.done %s401, 128
        $region52: #{scorer_forward.1} parent=47 // pred_fallthru
          _
        %s409 = sand.u32 %s31, 1
        %s410 = scalar_lea.sflag [#allocation6], %s409
        %s411 = sand.u32 %s88, 1
        %s412 = smul.addr %s411, 4
        %s413 = scalar_lea.vmem [#allocation5], %s412
        // Predicated region
        $region53: #{scorer_forward.1} parent=47 // pred_check
          %p414 = pneg %p101
        $region54: #{scorer_forward.1} parent=47 // pred_check_branch
          %416 = sbr.rel (%p414) target = $region56
        $region55: #{scorer_forward.1} parent=47 // pred_region
          %417 = dma.done %s410, 64
        $region56: #{scorer_forward.1} parent=47 // pred_fallthru
          _
        %s418 = sand.u32 %s31, 1
        %s419 = scalar_lea.sflag [#allocation6], %s418
        %s420 = sand.u32 %s116, 1
        %s421 = smul.addr %s420, 16
        %s422 = scalar_lea.vmem [#allocation7], %s421
        // Predicated region
        $region57: #{scorer_forward.1} parent=47 // pred_check
          %p423 = pneg %p129
        $region58: #{scorer_forward.1} parent=47 // pred_check_branch
          %425 = sbr.rel (%p423) target = $region60
        $region59: #{scorer_forward.1} parent=47 // pred_region
          %426 = dma.done %s419, 256
        $region60: #{scorer_forward.1} parent=47 // pred_fallthru
          _
        %s427 = sand.u32 %s31, 1
        %s428 = scalar_lea.sflag [#allocation9], %s427
        %s429 = sand.u32 %s144, 1
        %s430 = smul.addr %s429, 8
        %s431 = scalar_lea.vmem [#allocation8], %s430
        // Predicated region
        $region61: #{scorer_forward.1} parent=47 // pred_check
          %p432 = pneg %p157
        $region62: #{scorer_forward.1} parent=47 // pred_check_branch
          %434 = sbr.rel (%p432) target = $region64
        $region63: #{scorer_forward.1} parent=47 // pred_region
          %435 = dma.done %s428, 128
        $region64: #{scorer_forward.1} parent=47 // pred_fallthru
          _
        // Predicated region
        $region65: #{scorer_forward.1} parent=47 // pred_check
          %p436 = pneg %p178
        $region66: #{scorer_forward.1} parent=47 // pred_check_branch
          %438 = sbr.rel (%p436) target = $region68
        $region67: #{scorer_forward.1} parent=47 // pred_region
          %439 = dma.done [#allocation9], 1024
        $region68: #{scorer_forward.1} parent=47 // pred_fallthru
          _
        // Predicated region
        $region69: #{scorer_forward.1} parent=47 // pred_check
          %p440 = pneg %p199
        $region70: #{scorer_forward.1} parent=47 // pred_check_branch
          %442 = sbr.rel (%p440) target = $region72
        $region71: #{scorer_forward.1} parent=47 // pred_region
          %443 = dma.done [#allocation12], 2048
        $region72: #{scorer_forward.1} parent=47 // pred_fallthru
          _
        // Predicated region
        $region73: #{scorer_forward.1} parent=47 // pred_check
          %p444 = pneg %p220
        $region74: #{scorer_forward.1} parent=47 // pred_check_branch
          %446 = sbr.rel (%p444) target = $region76
        $region75: #{scorer_forward.1} parent=47 // pred_region
          %447 = dma.done [#allocation12], 16
        $region76: #{scorer_forward.1} parent=47 // pred_fallthru
          _
        %s448 = sand.u32 %s60, 1
        %s449 = scalar_lea.sflag [#allocation3], %s448
        %s450 = sand.u32 %s60, 1
        %s451 = smul.addr %s450, 8
        %s452 = scalar_lea.vmem [#allocation2], %s451
        %p453 = pneg %p73
        %p454 = pneg %p70
        %s455 = sand.u32 %s31, 1
        %s456 = scalar_lea.sflag [#allocation6], %s455
        %s457 = sand.u32 %s88, 1
        %s458 = smul.addr %s457, 4
        %s459 = scalar_lea.vmem [#allocation5], %s458
        %p460 = pneg %p101
        %p461 = pneg %p98
        %s462 = sand.u32 %s31, 1
        %s463 = scalar_lea.sflag [#allocation6], %s462
        %s464 = sand.u32 %s116, 1
        %s465 = smul.addr %s464, 16
        %s466 = scalar_lea.vmem [#allocation7], %s465
        %p467 = pneg %p129
        %p468 = pneg %p126
        %s469 = sand.u32 %s31, 1
        %s470 = scalar_lea.sflag [#allocation9], %s469
        %s471 = sand.u32 %s144, 1
        %s472 = smul.addr %s471, 8
        %s473 = scalar_lea.vmem [#allocation8], %s472
        %p474 = pneg %p157
        %p475 = pneg %p154
        %p476 = pneg %p178
        %p477 = pneg %p175
        %p478 = pneg %p199
        %p479 = pneg %p196
        %p480 = pneg %p220
        %p481 = pneg %p217
        %p482 = pneg %p250
        %p483 = pneg %p247
        %s484 = sand.u32 %s237, 1
        %s485 = scalar_lea.sflag [#allocation4], %s484
        %s486 = sand.u32 %s237, 1
        %s487 = smul.addr %s486, 48
        %s488 = scalar_lea.vmem [#allocation14], %s487
        %s489 = smul.u32 2, %s37
        %s490 = smul.u32 2, %s37
        %s491 = smul.u32 2, %s37
        %v493 = vld [vmem:[%s404] sm:$0xf]
        %v494 = vld [vmem:[%s404 + $0x4] sm:$0xf]
        %v495 = vld [vmem:[%s413] sm:$0xf]
        %v499 = vunpack.c.l.s4 1966171168
        %v500 = vunpack.c.0.s8 %v499
        %v501 = vlaneseq
        %v502 = vshrl.u32 %v501, 7
        %v503 = vsub.s32 %v500, %v502
        %v504 = vrot.slane %v493, %v503
        %v505 = vcombine.high %v504, %v504
        %v507 = vunpack.c.l.s4 1966171168
        %v508 = vunpack.c.0.s8 %v507
        %v509 = vlaneseq
        %v510 = vshrl.u32 %v509, 7
        %v511 = vsub.s32 %v508, %v510
        %v512 = vrot.slane %v504, %v511
        %v514 = vunpack.c.l.s4 1966171168
        %v515 = vunpack.c.0.s8 %v514
        %v516 = vlaneseq
        %v517 = vshrl.u32 %v516, 7
        %v518 = vsub.s32 %v515, %v517
        %v519 = vrot.slane %v505, %v518
        %v520 = vcombine.high %v512, %v512
        %v521 = vcombine.high %v519, %v519
        %v523 = vunpack.c.l.s4 1966171168
        %v524 = vunpack.c.0.s8 %v523
        %v525 = vlaneseq
        %v526 = vshrl.u32 %v525, 7
        %v527 = vsub.s32 %v524, %v526
        %v528 = vrot.slane %v494, %v527
        %v529 = vcombine.high %v528, %v528
        %v531 = vunpack.c.l.s4 1966171168
        %v532 = vunpack.c.0.s8 %v531
        %v533 = vlaneseq
        %v534 = vshrl.u32 %v533, 7
        %v535 = vsub.s32 %v532, %v534
        %v536 = vrot.slane %v528, %v535
        %v538 = vunpack.c.l.s4 1966171168
        %v539 = vunpack.c.0.s8 %v538
        %v540 = vlaneseq
        %v541 = vshrl.u32 %v540, 7
        %v542 = vsub.s32 %v539, %v541
        %v543 = vrot.slane %v529, %v542
        %v544 = vcombine.high %v536, %v536
        %v545 = vcombine.high %v543, %v543
        %v546 = vunpack.i.l.s16 %v512
        %v547 = vunpack.i.h.s16 %v512
        %v548 = vunpack.i.l.s16 %v519
        %v549 = vunpack.i.h.s16 %v519
        %v550 = vunpack.i.l.s16 %v520
        %v551 = vunpack.i.h.s16 %v520
        %v552 = vunpack.i.l.s16 %v521
        %v553 = vunpack.i.h.s16 %v521
        %v554 = vunpack.i.l.s16 %v536
        %v555 = vunpack.i.h.s16 %v536
        %v556 = vunpack.i.l.s16 %v543
        %v557 = vunpack.i.h.s16 %v543
        %v558 = vunpack.i.l.s16 %v544
        %v559 = vunpack.i.h.s16 %v544
        %v560 = vunpack.i.l.s16 %v545
        %v561 = vunpack.i.h.s16 %v545
        %v562 = vpack.i.b16 %v546, %v546
        %v563 = vpack.i.b16 %v547, %v547
        %v564 = vpack.i.b16 %v548, %v548
        %v565 = vpack.i.b16 %v549, %v549
        %v566 = vpack.i.b16 %v550, %v550
        %v567 = vpack.i.b16 %v551, %v551
        %v568 = vpack.i.b16 %v552, %v552
        %v569 = vpack.i.b16 %v553, %v553
        %v570 = vpack.i.b16 %v554, %v554
        %v571 = vpack.i.b16 %v555, %v555
        %v572 = vpack.i.b16 %v556, %v556
        %v573 = vpack.i.b16 %v557, %v557
        %v574 = vpack.i.b16 %v558, %v558
        %v575 = vpack.i.b16 %v559, %v559
        %v576 = vpack.i.b16 %v560, %v560
        %v577 = vpack.i.b16 %v561, %v561
        %v578 = vlaneseq
        %v579 = vshrl.u32 %v578, 7
        %v580 = vsub.s32 0, %v579
        %v581 = vrot.slane %v562, %v580
        %v582 = vlaneseq
        %v583 = vshrl.u32 %v582, 7
        %v584 = vsub.s32 0, %v583
        %v585 = vrot.slane %v563, %v584
        %v586 = vlaneseq
        %v587 = vshrl.u32 %v586, 7
        %v588 = vsub.s32 0, %v587
        %v589 = vrot.slane %v564, %v588
        %v590 = vlaneseq
        %v591 = vshrl.u32 %v590, 7
        %v592 = vsub.s32 0, %v591
        %v593 = vrot.slane %v565, %v592
        %v594 = vlaneseq
        %v595 = vshrl.u32 %v594, 7
        %v596 = vsub.s32 0, %v595
        %v597 = vrot.slane %v566, %v596
        %v598 = vlaneseq
        %v599 = vshrl.u32 %v598, 7
        %v600 = vsub.s32 0, %v599
        %v601 = vrot.slane %v567, %v600
        %v602 = vlaneseq
        %v603 = vshrl.u32 %v602, 7
        %v604 = vsub.s32 0, %v603
        %v605 = vrot.slane %v568, %v604
        %v606 = vlaneseq
        %v607 = vshrl.u32 %v606, 7
        %v608 = vsub.s32 0, %v607
        %v609 = vrot.slane %v569, %v608
        %v610 = vlaneseq
        %v611 = vshrl.u32 %v610, 7
        %v612 = vsub.s32 0, %v611
        %v613 = vrot.slane %v570, %v612
        %v614 = vlaneseq
        %v615 = vshrl.u32 %v614, 7
        %v616 = vsub.s32 0, %v615
        %v617 = vrot.slane %v571, %v616
        %v618 = vlaneseq
        %v619 = vshrl.u32 %v618, 7
        %v620 = vsub.s32 0, %v619
        %v621 = vrot.slane %v572, %v620
        %v622 = vlaneseq
        %v623 = vshrl.u32 %v622, 7
        %v624 = vsub.s32 0, %v623
        %v625 = vrot.slane %v573, %v624
        %v626 = vlaneseq
        %v627 = vshrl.u32 %v626, 7
        %v628 = vsub.s32 0, %v627
        %v629 = vrot.slane %v574, %v628
        %v630 = vlaneseq
        %v631 = vshrl.u32 %v630, 7
        %v632 = vsub.s32 0, %v631
        %v633 = vrot.slane %v575, %v632
        %v634 = vlaneseq
        %v635 = vshrl.u32 %v634, 7
        %v636 = vsub.s32 0, %v635
        %v637 = vrot.slane %v576, %v636
        %v638 = vlaneseq
        %v639 = vshrl.u32 %v638, 7
        %v640 = vsub.s32 0, %v639
        %v641 = vrot.slane %v577, %v640
        %v643 = vpack.i.b16 %v581, %v581
        %v645 = vlaneseq
        %v646 = vshrl.u32 %v645, 7
        %v647 = vsub.s32 0, %v646
        %v648 = vrot.slane %v643, %v647
        %v650 = vpack.i.b16 %v585, %v585
        %v652 = vlaneseq
        %v653 = vshrl.u32 %v652, 7
        %v654 = vsub.s32 0, %v653
        %v655 = vrot.slane %v650, %v654
        %v657 = vpack.i.b16 %v589, %v589
        %v659 = vlaneseq
        %v660 = vshrl.u32 %v659, 7
        %v661 = vsub.s32 0, %v660
        %v662 = vrot.slane %v657, %v661
        %v664 = vpack.i.b16 %v593, %v593
        %v666 = vlaneseq
        %v667 = vshrl.u32 %v666, 7
        %v668 = vsub.s32 0, %v667
        %v669 = vrot.slane %v664, %v668
        %v671 = vpack.i.b16 %v597, %v597
        %v673 = vlaneseq
        %v674 = vshrl.u32 %v673, 7
        %v675 = vsub.s32 0, %v674
        %v676 = vrot.slane %v671, %v675
        %v678 = vpack.i.b16 %v601, %v601
        %v680 = vlaneseq
        %v681 = vshrl.u32 %v680, 7
        %v682 = vsub.s32 0, %v681
        %v683 = vrot.slane %v678, %v682
        %v685 = vpack.i.b16 %v605, %v605
        %v687 = vlaneseq
        %v688 = vshrl.u32 %v687, 7
        %v689 = vsub.s32 0, %v688
        %v690 = vrot.slane %v685, %v689
        %v692 = vpack.i.b16 %v609, %v609
        %v694 = vlaneseq
        %v695 = vshrl.u32 %v694, 7
        %v696 = vsub.s32 0, %v695
        %v697 = vrot.slane %v692, %v696
        %v699 = vpack.i.b16 %v613, %v613
        %v701 = vlaneseq
        %v702 = vshrl.u32 %v701, 7
        %v703 = vsub.s32 0, %v702
        %v704 = vrot.slane %v699, %v703
        %v706 = vpack.i.b16 %v617, %v617
        %v708 = vlaneseq
        %v709 = vshrl.u32 %v708, 7
        %v710 = vsub.s32 0, %v709
        %v711 = vrot.slane %v706, %v710
        %v713 = vpack.i.b16 %v621, %v621
        %v715 = vlaneseq
        %v716 = vshrl.u32 %v715, 7
        %v717 = vsub.s32 0, %v716
        %v718 = vrot.slane %v713, %v717
        %v720 = vpack.i.b16 %v625, %v625
        %v722 = vlaneseq
        %v723 = vshrl.u32 %v722, 7
        %v724 = vsub.s32 0, %v723
        %v725 = vrot.slane %v720, %v724
        %v727 = vpack.i.b16 %v629, %v629
        %v729 = vlaneseq
        %v730 = vshrl.u32 %v729, 7
        %v731 = vsub.s32 0, %v730
        %v732 = vrot.slane %v727, %v731
        %v734 = vpack.i.b16 %v633, %v633
        %v736 = vlaneseq
        %v737 = vshrl.u32 %v736, 7
        %v738 = vsub.s32 0, %v737
        %v739 = vrot.slane %v734, %v738
        %v741 = vpack.i.b16 %v637, %v637
        %v743 = vlaneseq
        %v744 = vshrl.u32 %v743, 7
        %v745 = vsub.s32 0, %v744
        %v746 = vrot.slane %v741, %v745
        %v748 = vpack.i.b16 %v641, %v641
        %v750 = vlaneseq
        %v751 = vshrl.u32 %v750, 7
        %v752 = vsub.s32 0, %v751
        %v753 = vrot.slane %v748, %v752
        %v754 = vmul.bf16 %v648, %v495
        %v755 = vmul.bf16 %v655, %v495
        %v756 = vmul.bf16 %v662, %v495
        %v757 = vmul.bf16 %v669, %v495
        %v758 = vmul.bf16 %v676, %v495
        %v759 = vmul.bf16 %v683, %v495
        %v760 = vmul.bf16 %v690, %v495
        %v761 = vmul.bf16 %v697, %v495
        %v762 = vmul.bf16 %v704, %v495
        %v763 = vmul.bf16 %v711, %v495
        %v764 = vmul.bf16 %v718, %v495
        %v765 = vmul.bf16 %v725, %v495
        %v766 = vmul.bf16 %v732, %v495
        %v767 = vmul.bf16 %v739, %v495
        %v768 = vmul.bf16 %v746, %v495
        %v769 = vmul.bf16 %v753, %v495
        %v770 = vld [vmem:[#allocation10] sm:$0xff]
        %v771 = vld [vmem:[#allocation10 + $0x8] sm:$0xff]
        %v772 = vld [vmem:[#allocation10 + $0x10] sm:$0xff]
        %v773 = vld [vmem:[#allocation10 + $0x18] sm:$0xff]
        %v774 = vld [vmem:[#allocation10 + $0x20] sm:$0xff]
        %v775 = vld [vmem:[#allocation10 + $0x28] sm:$0xff]
        %v776 = vld [vmem:[#allocation10 + $0x30] sm:$0xff]
        %v777 = vld [vmem:[#allocation10 + $0x38] sm:$0xff]
        %v778 = vld [vmem:[%s422] sm:$0xff]
        %v779 = vld [vmem:[%s422 + $0x8] sm:$0xff]
        %v780 = vunpack.c.l.bf16 %v778
        %v781 = vunpack.c.h.bf16 %v778
        %v782 = vunpack.c.l.bf16 %v779
        %v783 = vunpack.c.h.bf16 %v779
        %v784 = vld [vmem:[%s431] sm:$0xff]
        %v785 = vunpack.c.l.bf16 %v784
        %v786 = vunpack.c.h.bf16 %v784
        %v787 = vld [vmem:[#allocation11] sm:$0xf]
        %v788 = vld [vmem:[#allocation11 + $0x4] sm:$0xf]
        %v789 = vld [vmem:[#allocation11 + $0x8] sm:$0xf]
        %v790 = vld [vmem:[#allocation11 + $0xc] sm:$0xf]
        %v791 = vld [vmem:[#allocation11 + $0x10] sm:$0xf]
        %v792 = vld [vmem:[#allocation11 + $0x14] sm:$0xf]
        %v793 = vld [vmem:[#allocation11 + $0x18] sm:$0xf]
        %v794 = vld [vmem:[#allocation11 + $0x1c] sm:$0xf]
        %v795 = vld [vmem:[#allocation11 + $0x20] sm:$0xf]
        %v796 = vld [vmem:[#allocation11 + $0x24] sm:$0xf]
        %v797 = vld [vmem:[#allocation11 + $0x28] sm:$0xf]
        %v798 = vld [vmem:[#allocation11 + $0x2c] sm:$0xf]
        %v799 = vld [vmem:[#allocation11 + $0x30] sm:$0xf]
        %v800 = vld [vmem:[#allocation11 + $0x34] sm:$0xf]
        %v801 = vld [vmem:[#allocation11 + $0x38] sm:$0xf]
        %v802 = vld [vmem:[#allocation11 + $0x3c] sm:$0xf]
        %v803 = vld [vmem:[#allocation11 + $0x40] sm:$0xf]
        %v804 = vld [vmem:[#allocation11 + $0x44] sm:$0xf]
        %v805 = vld [vmem:[#allocation11 + $0x48] sm:$0xf]
        %v806 = vld [vmem:[#allocation11 + $0x4c] sm:$0xf]
        %v807 = vld [vmem:[#allocation11 + $0x50] sm:$0xf]
        %v808 = vld [vmem:[#allocation11 + $0x54] sm:$0xf]
        %v809 = vld [vmem:[#allocation11 + $0x58] sm:$0xf]
        %v810 = vld [vmem:[#allocation11 + $0x5c] sm:$0xf]
        %v811 = vld [vmem:[#allocation11 + $0x60] sm:$0xf]
        %v812 = vld [vmem:[#allocation11 + $0x64] sm:$0xf]
        %v813 = vld [vmem:[#allocation11 + $0x68] sm:$0xf]
        %v814 = vld [vmem:[#allocation11 + $0x6c] sm:$0xf]
        %v815 = vld [vmem:[#allocation11 + $0x70] sm:$0xf]
        %v816 = vld [vmem:[#allocation11 + $0x74] sm:$0xf]
        %v817 = vld [vmem:[#allocation11 + $0x78] sm:$0xf]
        %v818 = vld [vmem:[#allocation11 + $0x7c] sm:$0xf]
        %v835 = vunpack.c.l.b16 %v754
        %v836 = vunpack.c.l.b16 %v755
        %v837 = vunpack.c.l.b16 %v756
        %v838 = vunpack.c.l.b16 %v757
        %v839 = vunpack.c.l.b16 %v758
        %v840 = vunpack.c.l.b16 %v759
        %v841 = vunpack.c.l.b16 %v760
        %v842 = vunpack.c.l.b16 %v761
        %v843 = vunpack.c.l.b16 %v762
        %v844 = vunpack.c.l.b16 %v763
        %v845 = vunpack.c.l.b16 %v764
        %v846 = vunpack.c.l.b16 %v765
        %v847 = vunpack.c.l.b16 %v766
        %v848 = vunpack.c.l.b16 %v767
        %v849 = vunpack.c.l.b16 %v768
        %v850 = vunpack.c.l.b16 %v769
        %v851 = vpack.c.b16 %v836, %v835
        %v852 = vpack.c.b16 %v838, %v837
        %v853 = vpack.c.b16 %v840, %v839
        %v854 = vpack.c.b16 %v842, %v841
        %v855 = vpack.c.b16 %v844, %v843
        %v856 = vpack.c.b16 %v846, %v845
        %v857 = vpack.c.b16 %v848, %v847
        %v858 = vpack.c.b16 %v850, %v849
        %v867 = vunpack.c.l.b16 %v770
        %v868 = vunpack.c.h.b16 %v770
        %v869 = vunpack.c.l.b16 %v771
        %v870 = vunpack.c.h.b16 %v771
        %v871 = vunpack.c.l.b16 %v772
        %v872 = vunpack.c.h.b16 %v772
        %v873 = vunpack.c.l.b16 %v773
        %v874 = vunpack.c.h.b16 %v773
        %v875 = vunpack.c.l.b16 %v774
        %v876 = vunpack.c.h.b16 %v774
        %v877 = vunpack.c.l.b16 %v775
        %v878 = vunpack.c.h.b16 %v775
        %v879 = vunpack.c.l.b16 %v776
        %v880 = vunpack.c.h.b16 %v776
        %v881 = vunpack.c.l.b16 %v777
        %v882 = vunpack.c.h.b16 %v777
        %v883 = vpack.c.b16 %v869, %v867
        %v884 = vpack.c.b16 %v870, %v868
        %v885 = vpack.c.b16 %v873, %v871
        %v886 = vpack.c.b16 %v874, %v872
        %v887 = vpack.c.b16 %v877, %v875
        %v888 = vpack.c.b16 %v878, %v876
        %v889 = vpack.c.b16 %v881, %v879
        %v890 = vpack.c.b16 %v882, %v880
        %vm899 = vcmask 523264
        %v901 = vsel %vm899, %v851, 0
        %v904 = vsel %vm899, %v852, 0
        %v907 = vsel %vm899, %v853, 0
        %v910 = vsel %vm899, %v854, 0
        %v913 = vsel %vm899, %v855, 0
        %v916 = vsel %vm899, %v856, 0
        %v919 = vsel %vm899, %v857, 0
        %v922 = vsel %vm899, %v858, 0
        %924 = vmatprep.subr.bf16.mxu0 %v884
        %925 = vmatpush1.bf16.msra.mxu0 %v883
        %926 = vmatprep.subr.bf16.mxu0 %v886
        %927 = vmatpush1.bf16.msra.mxu0 %v885
        %928 = vmatprep.subr.bf16.mxu0 %v888
        %929 = vmatpush1.bf16.msra.mxu0 %v887
        %930 = vmatprep.subr.bf16.mxu0 %v890
        %931 = vmatpush1.bf16.msra.mxu0 %v889
        %932 = vmatprep.subr.bf16.mxu0 0
        %933 = vmatpush1.bf16.msra.mxu0 0
        %934 = vmatprep.subr.bf16.mxu0 0
        %935 = vmatpush1.bf16.msra.mxu0 0
        %936 = vmatprep.subr.bf16.mxu0 0
        %937 = vmatpush1.bf16.msra.mxu0 0
        %938 = vmatprep.subr.bf16.mxu0 0
        %939 = vmatpush1.bf16.msra.mxu0 0
        %940 = vmatprep.subr.bf16.mxu0 0
        %941 = vmatpush1.bf16.msra.mxu0 0
        %942 = vmatprep.subr.bf16.mxu0 0
        %943 = vmatpush1.bf16.msra.mxu0 0
        %944 = vmatprep.subr.bf16.mxu0 0
        %945 = vmatpush1.bf16.msra.mxu0 0
        %946 = vmatprep.subr.bf16.mxu0 0
        %947 = vmatpush1.bf16.msra.mxu0 0
        %948 = vmatprep.subr.bf16.mxu0 0
        %949 = vmatpush1.bf16.msra.mxu0 0
        %950 = vmatprep.subr.bf16.mxu0 0
        %951 = vmatpush1.bf16.msra.mxu0 0
        %952 = vmatprep.subr.bf16.mxu0 0
        %953 = vmatpush1.bf16.msra.mxu0 0
        %954 = vmatprep.subr.bf16.mxu0 0
        %955 = vmatpush1.bf16.msra.mxu0 0
        %956 = vmatprep.mubr.bf16.mxu0 0
        %957 = vmatmul.mubr.bf16.gmra.mrb[0].mxu0 %v901
        %v958 = vpop.f32.mrb[0].mxu0
        %v959 = vadd.f32 0.0, %v958
        %v960 = vpop.f32.mrb[0].mxu0
        %v961 = vadd.f32 0.0, %v960
        %v962 = vpop.f32.mrb[0].mxu0
        %v963 = vadd.f32 0.0, %v962
        %v964 = vpop.f32.mrb[0].mxu0
        %v965 = vadd.f32 0.0, %v964
        %966 = vmatprep.mubr.bf16.mxu0 0
        %967 = vmatmul.mubr.bf16.gmra.mrb[0].mxu0 %v904
        %v968 = vpop.f32.mrb[0].mxu0
        %v969 = vadd.f32 0.0, %v968
        %v970 = vpop.f32.mrb[0].mxu0
        %v971 = vadd.f32 0.0, %v970
        %v972 = vpop.f32.mrb[0].mxu0
        %v973 = vadd.f32 0.0, %v972
        %v974 = vpop.f32.mrb[0].mxu0
        %v975 = vadd.f32 0.0, %v974
        %976 = vmatprep.mubr.bf16.mxu0 0
        %977 = vmatmul.mubr.bf16.gmra.mrb[0].mxu0 %v907
        %v978 = vpop.f32.mrb[0].mxu0
        %v979 = vadd.f32 0.0, %v978
        %v980 = vpop.f32.mrb[0].mxu0
        %v981 = vadd.f32 0.0, %v980
        %v982 = vpop.f32.mrb[0].mxu0
        %v983 = vadd.f32 0.0, %v982
        %v984 = vpop.f32.mrb[0].mxu0
        %v985 = vadd.f32 0.0, %v984
        %986 = vmatprep.mubr.bf16.mxu0 0
        %987 = vmatmul.mubr.bf16.gmra.mrb[0].mxu0 %v910
        %v988 = vpop.f32.mrb[0].mxu0
        %v989 = vadd.f32 0.0, %v988
        %v990 = vpop.f32.mrb[0].mxu0
        %v991 = vadd.f32 0.0, %v990
        %v992 = vpop.f32.mrb[0].mxu0
        %v993 = vadd.f32 0.0, %v992
        %v994 = vpop.f32.mrb[0].mxu0
        %v995 = vadd.f32 0.0, %v994
        %996 = vmatprep.mubr.bf16.mxu0 0
        %997 = vmatmul.mubr.bf16.gmra.mrb[0].mxu0 %v913
        %v998 = vpop.f32.mrb[0].mxu0
        %v999 = vadd.f32 0.0, %v998
        %v1000 = vpop.f32.mrb[0].mxu0
        %v1001 = vadd.f32 0.0, %v1000
        %v1002 = vpop.f32.mrb[0].mxu0
        %v1003 = vadd.f32 0.0, %v1002
        %v1004 = vpop.f32.mrb[0].mxu0
        %v1005 = vadd.f32 0.0, %v1004
        %1006 = vmatprep.mubr.bf16.mxu0 0
        %1007 = vmatmul.mubr.bf16.gmra.mrb[0].mxu0 %v916
        %v1008 = vpop.f32.mrb[0].mxu0
        %v1009 = vadd.f32 0.0, %v1008
        %v1010 = vpop.f32.mrb[0].mxu0
        %v1011 = vadd.f32 0.0, %v1010
        %v1012 = vpop.f32.mrb[0].mxu0
        %v1013 = vadd.f32 0.0, %v1012
        %v1014 = vpop.f32.mrb[0].mxu0
        %v1015 = vadd.f32 0.0, %v1014
        %1016 = vmatprep.mubr.bf16.mxu0 0
        %1017 = vmatmul.mubr.bf16.gmra.mrb[0].mxu0 %v919
        %v1018 = vpop.f32.mrb[0].mxu0
        %v1019 = vadd.f32 0.0, %v1018
        %v1020 = vpop.f32.mrb[0].mxu0
        %v1021 = vadd.f32 0.0, %v1020
        %v1022 = vpop.f32.mrb[0].mxu0
        %v1023 = vadd.f32 0.0, %v1022
        %v1024 = vpop.f32.mrb[0].mxu0
        %v1025 = vadd.f32 0.0, %v1024
        %1026 = vmatprep.mubr.bf16.mxu0 0
        %1027 = vmatmul.mubr.bf16.gmra.mrb[0].mxu0 %v922
        %v1028 = vpop.f32.mrb[0].mxu0
        %v1029 = vadd.f32 0.0, %v1028
        %v1030 = vpop.f32.mrb[0].mxu0
        %v1031 = vadd.f32 0.0, %v1030
        %v1032 = vpop.f32.mrb[0].mxu0
        %v1033 = vadd.f32 0.0, %v1032
        %v1034 = vpop.f32.mrb[0].mxu0
        %v1035 = vadd.f32 0.0, %v1034
        %1036 = vdwg.mxu0
        %v1041 = vcombine.low %v780, %v781
        %v1042 = vcombine.high %v780, %v781
        %v1044 = vunpack.c.l.s4 1966171168
        %v1045 = vunpack.c.0.s8 %v1044
        %v1046 = vlaneseq
        %v1047 = vshrl.u32 %v1046, 7
        %v1048 = vsub.s32 %v1045, %v1047
        %v1049 = vrot.slane %v1041, %v1048
        %v1051 = vunpack.c.l.s4 1966171168
        %v1052 = vunpack.c.0.s8 %v1051
        %v1053 = vlaneseq
        %v1054 = vshrl.u32 %v1053, 7
        %v1055 = vsub.s32 %v1052, %v1054
        %v1056 = vrot.slane %v1042, %v1055
        %v1057 = vcombine.high %v1049, %v1049
        %v1058 = vcombine.high %v1056, %v1056
        %v1060 = vunpack.c.l.s4 1966171168
        %v1061 = vunpack.c.0.s8 %v1060
        %v1062 = vlaneseq
        %v1063 = vshrl.u32 %v1062, 7
        %v1064 = vsub.s32 %v1061, %v1063
        %v1065 = vrot.slane %v1049, %v1064
        %v1067 = vunpack.c.l.s4 1966171168
        %v1068 = vunpack.c.0.s8 %v1067
        %v1069 = vlaneseq
        %v1070 = vshrl.u32 %v1069, 7
        %v1071 = vsub.s32 %v1068, %v1070
        %v1072 = vrot.slane %v1056, %v1071
        %v1074 = vunpack.c.l.s4 1966171168
        %v1075 = vunpack.c.0.s8 %v1074
        %v1076 = vlaneseq
        %v1077 = vshrl.u32 %v1076, 7
        %v1078 = vsub.s32 %v1075, %v1077
        %v1079 = vrot.slane %v1057, %v1078
        %v1081 = vunpack.c.l.s4 1966171168
        %v1082 = vunpack.c.0.s8 %v1081
        %v1083 = vlaneseq
        %v1084 = vshrl.u32 %v1083, 7
        %v1085 = vsub.s32 %v1082, %v1084
        %v1086 = vrot.slane %v1058, %v1085
        %v1087 = vcombine.high %v1065, %v1065
        %v1088 = vcombine.high %v1072, %v1072
        %v1089 = vcombine.high %v1079, %v1079
        %v1090 = vcombine.high %v1086, %v1086
        %v1091 = vcombine.low %v782, %v783
        %v1092 = vcombine.high %v782, %v783
        %v1094 = vunpack.c.l.s4 1966171168
        %v1095 = vunpack.c.0.s8 %v1094
        %v1096 = vlaneseq
        %v1097 = vshrl.u32 %v1096, 7
        %v1098 = vsub.s32 %v1095, %v1097
        %v1099 = vrot.slane %v1091, %v1098
        %v1101 = vunpack.c.l.s4 1966171168
        %v1102 = vunpack.c.0.s8 %v1101
        %v1103 = vlaneseq
        %v1104 = vshrl.u32 %v1103, 7
        %v1105 = vsub.s32 %v1102, %v1104
        %v1106 = vrot.slane %v1092, %v1105
        %v1107 = vcombine.high %v1099, %v1099
        %v1108 = vcombine.high %v1106, %v1106
        %v1110 = vunpack.c.l.s4 1966171168
        %v1111 = vunpack.c.0.s8 %v1110
        %v1112 = vlaneseq
        %v1113 = vshrl.u32 %v1112, 7
        %v1114 = vsub.s32 %v1111, %v1113
        %v1115 = vrot.slane %v1099, %v1114
        %v1117 = vunpack.c.l.s4 1966171168
        %v1118 = vunpack.c.0.s8 %v1117
        %v1119 = vlaneseq
        %v1120 = vshrl.u32 %v1119, 7
        %v1121 = vsub.s32 %v1118, %v1120
        %v1122 = vrot.slane %v1106, %v1121
        %v1124 = vunpack.c.l.s4 1966171168
        %v1125 = vunpack.c.0.s8 %v1124
        %v1126 = vlaneseq
        %v1127 = vshrl.u32 %v1126, 7
        %v1128 = vsub.s32 %v1125, %v1127
        %v1129 = vrot.slane %v1107, %v1128
        %v1131 = vunpack.c.l.s4 1966171168
        %v1132 = vunpack.c.0.s8 %v1131
        %v1133 = vlaneseq
        %v1134 = vshrl.u32 %v1133, 7
        %v1135 = vsub.s32 %v1132, %v1134
        %v1136 = vrot.slane %v1108, %v1135
        %v1137 = vcombine.high %v1115, %v1115
        %v1138 = vcombine.high %v1122, %v1122
        %v1139 = vcombine.high %v1129, %v1129
        %v1140 = vcombine.high %v1136, %v1136
        %v1141 = vlaneseq
        %v1142 = vshrl.u32 %v1141, 7
        %v1143 = vsub.s32 0, %v1142
        %v1144 = vrot.slane %v1065, %v1143
        %v1145 = vlaneseq
        %v1146 = vshrl.u32 %v1145, 7
        %v1147 = vsub.s32 1, %v1146
        %v1148 = vrot.slane %v1065, %v1147
        %v1149 = vlaneseq
        %v1150 = vshrl.u32 %v1149, 7
        %v1151 = vsub.s32 0, %v1150
        %v1152 = vrot.slane %v1079, %v1151
        %v1153 = vlaneseq
        %v1154 = vshrl.u32 %v1153, 7
        %v1155 = vsub.s32 1, %v1154
        %v1156 = vrot.slane %v1079, %v1155
        %v1157 = vlaneseq
        %v1158 = vshrl.u32 %v1157, 7
        %v1159 = vsub.s32 0, %v1158
        %v1160 = vrot.slane %v1087, %v1159
        %v1161 = vlaneseq
        %v1162 = vshrl.u32 %v1161, 7
        %v1163 = vsub.s32 1, %v1162
        %v1164 = vrot.slane %v1087, %v1163
        %v1165 = vlaneseq
        %v1166 = vshrl.u32 %v1165, 7
        %v1167 = vsub.s32 0, %v1166
        %v1168 = vrot.slane %v1089, %v1167
        %v1169 = vlaneseq
        %v1170 = vshrl.u32 %v1169, 7
        %v1171 = vsub.s32 1, %v1170
        %v1172 = vrot.slane %v1089, %v1171
        %v1173 = vlaneseq
        %v1174 = vshrl.u32 %v1173, 7
        %v1175 = vsub.s32 0, %v1174
        %v1176 = vrot.slane %v1072, %v1175
        %v1177 = vlaneseq
        %v1178 = vshrl.u32 %v1177, 7
        %v1179 = vsub.s32 1, %v1178
        %v1180 = vrot.slane %v1072, %v1179
        %v1181 = vlaneseq
        %v1182 = vshrl.u32 %v1181, 7
        %v1183 = vsub.s32 0, %v1182
        %v1184 = vrot.slane %v1086, %v1183
        %v1185 = vlaneseq
        %v1186 = vshrl.u32 %v1185, 7
        %v1187 = vsub.s32 1, %v1186
        %v1188 = vrot.slane %v1086, %v1187
        %v1189 = vlaneseq
        %v1190 = vshrl.u32 %v1189, 7
        %v1191 = vsub.s32 0, %v1190
        %v1192 = vrot.slane %v1088, %v1191
        %v1193 = vlaneseq
        %v1194 = vshrl.u32 %v1193, 7
        %v1195 = vsub.s32 1, %v1194
        %v1196 = vrot.slane %v1088, %v1195
        %v1197 = vlaneseq
        %v1198 = vshrl.u32 %v1197, 7
        %v1199 = vsub.s32 0, %v1198
        %v1200 = vrot.slane %v1090, %v1199
        %v1201 = vlaneseq
        %v1202 = vshrl.u32 %v1201, 7
        %v1203 = vsub.s32 1, %v1202
        %v1204 = vrot.slane %v1090, %v1203
        %v1205 = vlaneseq
        %v1206 = vshrl.u32 %v1205, 7
        %v1207 = vsub.s32 0, %v1206
        %v1208 = vrot.slane %v1115, %v1207
        %v1209 = vlaneseq
        %v1210 = vshrl.u32 %v1209, 7
        %v1211 = vsub.s32 1, %v1210
        %v1212 = vrot.slane %v1115, %v1211
        %v1213 = vlaneseq
        %v1214 = vshrl.u32 %v1213, 7
        %v1215 = vsub.s32 0, %v1214
        %v1216 = vrot.slane %v1129, %v1215
        %v1217 = vlaneseq
        %v1218 = vshrl.u32 %v1217, 7
        %v1219 = vsub.s32 1, %v1218
        %v1220 = vrot.slane %v1129, %v1219
        %v1221 = vlaneseq
        %v1222 = vshrl.u32 %v1221, 7
        %v1223 = vsub.s32 0, %v1222
        %v1224 = vrot.slane %v1137, %v1223
        %v1225 = vlaneseq
        %v1226 = vshrl.u32 %v1225, 7
        %v1227 = vsub.s32 1, %v1226
        %v1228 = vrot.slane %v1137, %v1227
        %v1229 = vlaneseq
        %v1230 = vshrl.u32 %v1229, 7
        %v1231 = vsub.s32 0, %v1230
        %v1232 = vrot.slane %v1139, %v1231
        %v1233 = vlaneseq
        %v1234 = vshrl.u32 %v1233, 7
        %v1235 = vsub.s32 1, %v1234
        %v1236 = vrot.slane %v1139, %v1235
        %v1237 = vlaneseq
        %v1238 = vshrl.u32 %v1237, 7
        %v1239 = vsub.s32 0, %v1238
        %v1240 = vrot.slane %v1122, %v1239
        %v1241 = vlaneseq
        %v1242 = vshrl.u32 %v1241, 7
        %v1243 = vsub.s32 1, %v1242
        %v1244 = vrot.slane %v1122, %v1243
        %v1245 = vlaneseq
        %v1246 = vshrl.u32 %v1245, 7
        %v1247 = vsub.s32 0, %v1246
        %v1248 = vrot.slane %v1136, %v1247
        %v1249 = vlaneseq
        %v1250 = vshrl.u32 %v1249, 7
        %v1251 = vsub.s32 1, %v1250
        %v1252 = vrot.slane %v1136, %v1251
        %v1253 = vlaneseq
        %v1254 = vshrl.u32 %v1253, 7
        %v1255 = vsub.s32 0, %v1254
        %v1256 = vrot.slane %v1138, %v1255
        %v1257 = vlaneseq
        %v1258 = vshrl.u32 %v1257, 7
        %v1259 = vsub.s32 1, %v1258
        %v1260 = vrot.slane %v1138, %v1259
        %v1261 = vlaneseq
        %v1262 = vshrl.u32 %v1261, 7
        %v1263 = vsub.s32 0, %v1262
        %v1264 = vrot.slane %v1140, %v1263
        %v1265 = vlaneseq
        %v1266 = vshrl.u32 %v1265, 7
        %v1267 = vsub.s32 1, %v1266
        %v1268 = vrot.slane %v1140, %v1267
        %v1301 = vadd.f32 %v959, %v1144
        %v1302 = vadd.f32 %v961, %v1148
        %v1303 = vadd.f32 %v963, %v1152
        %v1304 = vadd.f32 %v965, %v1156
        %v1305 = vadd.f32 %v969, %v1160
        %v1306 = vadd.f32 %v971, %v1164
        %v1307 = vadd.f32 %v973, %v1168
        %v1308 = vadd.f32 %v975, %v1172
        %v1309 = vadd.f32 %v979, %v1176
        %v1310 = vadd.f32 %v981, %v1180
        %v1311 = vadd.f32 %v983, %v1184
        %v1312 = vadd.f32 %v985, %v1188
        %v1313 = vadd.f32 %v989, %v1192
        %v1314 = vadd.f32 %v991, %v1196
        %v1315 = vadd.f32 %v993, %v1200
        %v1316 = vadd.f32 %v995, %v1204
        %v1317 = vadd.f32 %v999, %v1208
        %v1318 = vadd.f32 %v1001, %v1212
        %v1319 = vadd.f32 %v1003, %v1216
        %v1320 = vadd.f32 %v1005, %v1220
        %v1321 = vadd.f32 %v1009, %v1224
        %v1322 = vadd.f32 %v1011, %v1228
        %v1323 = vadd.f32 %v1013, %v1232
        %v1324 = vadd.f32 %v1015, %v1236
        %v1325 = vadd.f32 %v1019, %v1240
        %v1326 = vadd.f32 %v1021, %v1244
        %v1327 = vadd.f32 %v1023, %v1248
        %v1328 = vadd.f32 %v1025, %v1252
        %v1329 = vadd.f32 %v1029, %v1256
        %v1330 = vadd.f32 %v1031, %v1260
        %v1331 = vadd.f32 %v1033, %v1264
        %v1332 = vadd.f32 %v1035, %v1268
        %v1333 = vadd.f32 %v1301, %v785
        %v1334 = vadd.f32 %v1302, %v786
        %v1335 = vadd.f32 %v1303, %v785
        %v1336 = vadd.f32 %v1304, %v786
        %v1337 = vadd.f32 %v1305, %v785
        %v1338 = vadd.f32 %v1306, %v786
        %v1339 = vadd.f32 %v1307, %v785
        %v1340 = vadd.f32 %v1308, %v786
        %v1341 = vadd.f32 %v1309, %v785
        %v1342 = vadd.f32 %v1310, %v786
        %v1343 = vadd.f32 %v1311, %v785
        %v1344 = vadd.f32 %v1312, %v786
        %v1345 = vadd.f32 %v1313, %v785
        %v1346 = vadd.f32 %v1314, %v786
        %v1347 = vadd.f32 %v1315, %v785
        %v1348 = vadd.f32 %v1316, %v786
        %v1349 = vadd.f32 %v1317, %v785
        %v1350 = vadd.f32 %v1318, %v786
        %v1351 = vadd.f32 %v1319, %v785
        %v1352 = vadd.f32 %v1320, %v786
        %v1353 = vadd.f32 %v1321, %v785
        %v1354 = vadd.f32 %v1322, %v786
        %v1355 = vadd.f32 %v1323, %v785
        %v1356 = vadd.f32 %v1324, %v786
        %v1357 = vadd.f32 %v1325, %v785
        %v1358 = vadd.f32 %v1326, %v786
        %v1359 = vadd.f32 %v1327, %v785
        %v1360 = vadd.f32 %v1328, %v786
        %v1361 = vadd.f32 %v1329, %v785
        %v1362 = vadd.f32 %v1330, %v786
        %v1363 = vadd.f32 %v1331, %v785
        %v1364 = vadd.f32 %v1332, %v786
        %v1365 = vmax.f32 %v1333, 0.0
        %v1366 = vmax.f32 %v1334, 0.0
        %v1367 = vmax.f32 %v1335, 0.0
        %v1368 = vmax.f32 %v1336, 0.0
        %v1369 = vmax.f32 %v1337, 0.0
        %v1370 = vmax.f32 %v1338, 0.0
        %v1371 = vmax.f32 %v1339, 0.0
        %v1372 = vmax.f32 %v1340, 0.0
        %v1373 = vmax.f32 %v1341, 0.0
        %v1374 = vmax.f32 %v1342, 0.0
        %v1375 = vmax.f32 %v1343, 0.0
        %v1376 = vmax.f32 %v1344, 0.0
        %v1377 = vmax.f32 %v1345, 0.0
        %v1378 = vmax.f32 %v1346, 0.0
        %v1379 = vmax.f32 %v1347, 0.0
        %v1380 = vmax.f32 %v1348, 0.0
        %v1381 = vmax.f32 %v1349, 0.0
        %v1382 = vmax.f32 %v1350, 0.0
        %v1383 = vmax.f32 %v1351, 0.0
        %v1384 = vmax.f32 %v1352, 0.0
        %v1385 = vmax.f32 %v1353, 0.0
        %v1386 = vmax.f32 %v1354, 0.0
        %v1387 = vmax.f32 %v1355, 0.0
        %v1388 = vmax.f32 %v1356, 0.0
        %v1389 = vmax.f32 %v1357, 0.0
        %v1390 = vmax.f32 %v1358, 0.0
        %v1391 = vmax.f32 %v1359, 0.0
        %v1392 = vmax.f32 %v1360, 0.0
        %v1393 = vmax.f32 %v1361, 0.0
        %v1394 = vmax.f32 %v1362, 0.0
        %v1395 = vmax.f32 %v1363, 0.0
        %v1396 = vmax.f32 %v1364, 0.0
        %v1397 = vpack.c.bf16 %v1367, %v1365
        %v1398 = vpack.c.bf16 %v1368, %v1366
        %v1399 = vpack.c.bf16 %v1371, %v1369
        %v1400 = vpack.c.bf16 %v1372, %v1370
        %v1401 = vpack.c.bf16 %v1375, %v1373
        %v1402 = vpack.c.bf16 %v1376, %v1374
        %v1403 = vpack.c.bf16 %v1379, %v1377
        %v1404 = vpack.c.bf16 %v1380, %v1378
        %v1405 = vpack.c.bf16 %v1383, %v1381
        %v1406 = vpack.c.bf16 %v1384, %v1382
        %v1407 = vpack.c.bf16 %v1387, %v1385
        %v1408 = vpack.c.bf16 %v1388, %v1386
        %v1409 = vpack.c.bf16 %v1391, %v1389
        %v1410 = vpack.c.bf16 %v1392, %v1390
        %v1411 = vpack.c.bf16 %v1395, %v1393
        %v1412 = vpack.c.bf16 %v1396, %v1394
        %v1413 = vld [vmem:[#allocation13] sm:$0x1]
        %v1415 = vlaneseq
        %v1416 = vshrl.u32 %v1415, 7
        %v1417 = vsub.s32 0, %v1416
        %v1418 = vrot.slane %v1413, %v1417
        %v1452 = vunpack.c.l.b16 %v787
        %v1453 = vunpack.c.l.b16 %v788
        %v1454 = vunpack.c.l.b16 %v789
        %v1455 = vunpack.c.l.b16 %v790
        %v1456 = vunpack.c.l.b16 %v791
        %v1457 = vunpack.c.l.b16 %v792
        %v1458 = vunpack.c.l.b16 %v793
        %v1459 = vunpack.c.l.b16 %v794
        %v1460 = vunpack.c.l.b16 %v795
        %v1461 = vunpack.c.l.b16 %v796
        %v1462 = vunpack.c.l.b16 %v797
        %v1463 = vunpack.c.l.b16 %v798
        %v1464 = vunpack.c.l.b16 %v799
        %v1465 = vunpack.c.l.b16 %v800
        %v1466 = vunpack.c.l.b16 %v801
        %v1467 = vunpack.c.l.b16 %v802
        %v1468 = vunpack.c.l.b16 %v803
        %v1469 = vunpack.c.l.b16 %v804
        %v1470 = vunpack.c.l.b16 %v805
        %v1471 = vunpack.c.l.b16 %v806
        %v1472 = vunpack.c.l.b16 %v807
        %v1473 = vunpack.c.l.b16 %v808
        %v1474 = vunpack.c.l.b16 %v809
        %v1475 = vunpack.c.l.b16 %v810
        %v1476 = vunpack.c.l.b16 %v811
        %v1477 = vunpack.c.l.b16 %v812
        %v1478 = vunpack.c.l.b16 %v813
        %v1479 = vunpack.c.l.b16 %v814
        %v1480 = vunpack.c.l.b16 %v815
        %v1481 = vunpack.c.l.b16 %v816
        %v1482 = vunpack.c.l.b16 %v817
        %v1483 = vunpack.c.l.b16 %v818
        %v1484 = vpack.c.b16 %v1453, %v1452
        %v1485 = vpack.c.b16 %v1455, %v1454
        %v1486 = vpack.c.b16 %v1457, %v1456
        %v1487 = vpack.c.b16 %v1459, %v1458
        %v1488 = vpack.c.b16 %v1461, %v1460
        %v1489 = vpack.c.b16 %v1463, %v1462
        %v1490 = vpack.c.b16 %v1465, %v1464
        %v1491 = vpack.c.b16 %v1467, %v1466
        %v1492 = vpack.c.b16 %v1469, %v1468
        %v1493 = vpack.c.b16 %v1471, %v1470
        %v1494 = vpack.c.b16 %v1473, %v1472
        %v1495 = vpack.c.b16 %v1475, %v1474
        %v1496 = vpack.c.b16 %v1477, %v1476
        %v1497 = vpack.c.b16 %v1479, %v1478
        %v1498 = vpack.c.b16 %v1481, %v1480
        %v1499 = vpack.c.b16 %v1483, %v1482
        %1516 = vmatprep.subr.bf16.mxu0 0
        %1517 = vmatpush1.bf16.msra.mxu0 %v1484
        %1518 = vmatprep.subr.bf16.mxu0 0
        %1519 = vmatpush1.bf16.msra.mxu0 %v1485
        %1520 = vmatprep.subr.bf16.mxu0 0
        %1521 = vmatpush1.bf16.msra.mxu0 %v1486
        %1522 = vmatprep.subr.bf16.mxu0 0
        %1523 = vmatpush1.bf16.msra.mxu0 %v1487
        %1524 = vmatprep.subr.bf16.mxu0 0
        %1525 = vmatpush1.bf16.msra.mxu0 %v1488
        %1526 = vmatprep.subr.bf16.mxu0 0
        %1527 = vmatpush1.bf16.msra.mxu0 %v1489
        %1528 = vmatprep.subr.bf16.mxu0 0
        %1529 = vmatpush1.bf16.msra.mxu0 %v1490
        %1530 = vmatprep.subr.bf16.mxu0 0
        %1531 = vmatpush1.bf16.msra.mxu0 %v1491
        %1532 = vmatprep.subr.bf16.mxu0 0
        %1533 = vmatpush1.bf16.msra.mxu0 %v1492
        %1534 = vmatprep.subr.bf16.mxu0 0
        %1535 = vmatpush1.bf16.msra.mxu0 %v1493
        %1536 = vmatprep.subr.bf16.mxu0 0
        %1537 = vmatpush1.bf16.msra.mxu0 %v1494
        %1538 = vmatprep.subr.bf16.mxu0 0
        %1539 = vmatpush1.bf16.msra.mxu0 %v1495
        %1540 = vmatprep.subr.bf16.mxu0 0
        %1541 = vmatpush1.bf16.msra.mxu0 %v1496
        %1542 = vmatprep.subr.bf16.mxu0 0
        %1543 = vmatpush1.bf16.msra.mxu0 %v1497
        %1544 = vmatprep.subr.bf16.mxu0 0
        %1545 = vmatpush1.bf16.msra.mxu0 %v1498
        %1546 = vmatprep.subr.bf16.mxu0 0
        %1547 = vmatpush1.bf16.msra.mxu0 %v1499
        %1548 = vmatprep.mubr.bf16.mxu0 %v1398
        %1549 = vmatmul.mubr.bf16.gmra.mrb[0].mxu0 %v1397
        %v1550 = vpop.f32.mrb[0].mxu0
        %v1551 = vadd.f32 %v1418, %v1550
        %v1552 = vpop.f32.mrb[0].mxu0
        %v1553 = vpop.f32.mrb[0].mxu0
        %v1554 = vadd.f32 %v1418, %v1553
        %v1555 = vpop.f32.mrb[0].mxu0
        %1556 = vmatprep.mubr.bf16.mxu0 %v1400
        %1557 = vmatmul.mubr.bf16.gmra.mrb[0].mxu0 %v1399
        %v1558 = vpop.f32.mrb[0].mxu0
        %v1559 = vadd.f32 %v1418, %v1558
        %v1560 = vpop.f32.mrb[0].mxu0
        %v1561 = vpop.f32.mrb[0].mxu0
        %v1562 = vadd.f32 %v1418, %v1561
        %v1563 = vpop.f32.mrb[0].mxu0
        %1564 = vmatprep.mubr.bf16.mxu0 %v1402
        %1565 = vmatmul.mubr.bf16.gmra.mrb[0].mxu0 %v1401
        %v1566 = vpop.f32.mrb[0].mxu0
        %v1567 = vadd.f32 %v1418, %v1566
        %v1568 = vpop.f32.mrb[0].mxu0
        %v1569 = vpop.f32.mrb[0].mxu0
        %v1570 = vadd.f32 %v1418, %v1569
        %v1571 = vpop.f32.mrb[0].mxu0
        %1572 = vmatprep.mubr.bf16.mxu0 %v1404
        %1573 = vmatmul.mubr.bf16.gmra.mrb[0].mxu0 %v1403
        %v1574 = vpop.f32.mrb[0].mxu0
        %v1575 = vadd.f32 %v1418, %v1574
        %v1576 = vpop.f32.mrb[0].mxu0
        %v1577 = vpop.f32.mrb[0].mxu0
        %v1578 = vadd.f32 %v1418, %v1577
        %v1579 = vpop.f32.mrb[0].mxu0
        %1580 = vmatprep.mubr.bf16.mxu0 %v1406
        %1581 = vmatmul.mubr.bf16.gmra.mrb[0].mxu0 %v1405
        %v1582 = vpop.f32.mrb[0].mxu0
        %v1583 = vadd.f32 %v1418, %v1582
        %v1584 = vpop.f32.mrb[0].mxu0
        %v1585 = vpop.f32.mrb[0].mxu0
        %v1586 = vadd.f32 %v1418, %v1585
        %v1587 = vpop.f32.mrb[0].mxu0
        %1588 = vmatprep.mubr.bf16.mxu0 %v1408
        %1589 = vmatmul.mubr.bf16.gmra.mrb[0].mxu0 %v1407
        %v1590 = vpop.f32.mrb[0].mxu0
        %v1591 = vadd.f32 %v1418, %v1590
        %v1592 = vpop.f32.mrb[0].mxu0
        %v1593 = vpop.f32.mrb[0].mxu0
        %v1594 = vadd.f32 %v1418, %v1593
        %v1595 = vpop.f32.mrb[0].mxu0
        %1596 = vmatprep.mubr.bf16.mxu0 %v1410
        %1597 = vmatmul.mubr.bf16.gmra.mrb[0].mxu0 %v1409
        %v1598 = vpop.f32.mrb[0].mxu0
        %v1599 = vadd.f32 %v1418, %v1598
        %v1600 = vpop.f32.mrb[0].mxu0
        %v1601 = vpop.f32.mrb[0].mxu0
        %v1602 = vadd.f32 %v1418, %v1601
        %v1603 = vpop.f32.mrb[0].mxu0
        %1604 = vmatprep.mubr.bf16.mxu0 %v1412
        %1605 = vmatmul.mubr.bf16.gmra.mrb[0].mxu0 %v1411
        %v1606 = vpop.f32.mrb[0].mxu0
        %v1607 = vadd.f32 %v1418, %v1606
        %v1608 = vpop.f32.mrb[0].mxu0
        %v1609 = vpop.f32.mrb[0].mxu0
        %v1610 = vadd.f32 %v1418, %v1609
        %v1611 = vpop.f32.mrb[0].mxu0
        %1612 = vdwg.mxu0
        %v1613 = vlaneseq
        %v1614 = vand.u32 %v1613, 127
        %vm1615 = vcmp.eq.s32.totalorder %v1614, 0
        %v1616 = vsel %vm1615, %v1551, 0.0
        %v1617 = vsel %vm1615, %v1554, 0.0
        %v1618 = vsel %vm1615, %v1559, 0.0
        %v1619 = vsel %vm1615, %v1562, 0.0
        %v1620 = vsel %vm1615, %v1567, 0.0
        %v1621 = vsel %vm1615, %v1570, 0.0
        %v1622 = vsel %vm1615, %v1575, 0.0
        %v1623 = vsel %vm1615, %v1578, 0.0
        %v1624 = vsel %vm1615, %v1583, 0.0
        %v1625 = vsel %vm1615, %v1586, 0.0
        %v1626 = vsel %vm1615, %v1591, 0.0
        %v1627 = vsel %vm1615, %v1594, 0.0
        %v1628 = vsel %vm1615, %v1599, 0.0
        %v1629 = vsel %vm1615, %v1602, 0.0
        %v1630 = vsel %vm1615, %v1607, 0.0
        %v1631 = vsel %vm1615, %v1610, 0.0
        %vm1632 = vcmask 23552
        %v1633 = vsel %vm1632, %v1616, 0.0
        %1634 = vadd.xlane.f32.xlu0 %v1633
        %v1635 = vpop.xlane.xlu0 %1634
        %v1636 = vsel %vm1632, %v1617, 0.0
        %1637 = vadd.xlane.f32.xlu0 %v1636
        %v1638 = vpop.xlane.xlu0 %1637
        %v1639 = vsel %vm1632, %v1618, 0.0
        %1640 = vadd.xlane.f32.xlu0 %v1639
        %v1641 = vpop.xlane.xlu0 %1640
        %v1642 = vsel %vm1632, %v1619, 0.0
        %1643 = vadd.xlane.f32.xlu0 %v1642
        %v1644 = vpop.xlane.xlu0 %1643
        %v1645 = vsel %vm1632, %v1620, 0.0
        %1646 = vadd.xlane.f32.xlu0 %v1645
        %v1647 = vpop.xlane.xlu0 %1646
        %v1648 = vsel %vm1632, %v1621, 0.0
        %1649 = vadd.xlane.f32.xlu0 %v1648
        %v1650 = vpop.xlane.xlu0 %1649
        %v1651 = vsel %vm1632, %v1622, 0.0
        %1652 = vadd.xlane.f32.xlu0 %v1651
        %v1653 = vpop.xlane.xlu0 %1652
        %v1654 = vsel %vm1632, %v1623, 0.0
        %1655 = vadd.xlane.f32.xlu0 %v1654
        %v1656 = vpop.xlane.xlu0 %1655
        %v1657 = vsel %vm1632, %v1624, 0.0
        %1658 = vadd.xlane.f32.xlu0 %v1657
        %v1659 = vpop.xlane.xlu0 %1658
        %v1660 = vsel %vm1632, %v1625, 0.0
        %1661 = vadd.xlane.f32.xlu0 %v1660
        %v1662 = vpop.xlane.xlu0 %1661
        %v1663 = vsel %vm1632, %v1626, 0.0
        %1664 = vadd.xlane.f32.xlu0 %v1663
        %v1665 = vpop.xlane.xlu0 %1664
        %v1666 = vsel %vm1632, %v1627, 0.0
        %1667 = vadd.xlane.f32.xlu0 %v1666
        %v1668 = vpop.xlane.xlu0 %1667
        %v1669 = vsel %vm1632, %v1628, 0.0
        %1670 = vadd.xlane.f32.xlu0 %v1669
        %v1671 = vpop.xlane.xlu0 %1670
        %v1672 = vsel %vm1632, %v1629, 0.0
        %1673 = vadd.xlane.f32.xlu0 %v1672
        %v1674 = vpop.xlane.xlu0 %1673
        %v1675 = vsel %vm1632, %v1630, 0.0
        %1676 = vadd.xlane.f32.xlu0 %v1675
        %v1677 = vpop.xlane.xlu0 %1676
        %v1678 = vsel %vm1632, %v1631, 0.0
        %1679 = vadd.xlane.f32.xlu0 %v1678
        %v1680 = vpop.xlane.xlu0 %1679
        %v1697 = vlaneseq
        %v1698 = vshrl.u32 %v1697, 7
        %v1699 = vsub.s32 %v1614, %v1698
        %v1700 = vrot.slane %v1635, %v1699
        %v1701 = vlaneseq
        %v1702 = vshrl.u32 %v1701, 7
        %v1703 = vsub.s32 %v1614, %v1702
        %v1704 = vrot.slane %v1638, %v1703
        %v1705 = vlaneseq
        %v1706 = vshrl.u32 %v1705, 7
        %v1707 = vsub.s32 %v1614, %v1706
        %v1708 = vrot.slane %v1641, %v1707
        %v1709 = vlaneseq
        %v1710 = vshrl.u32 %v1709, 7
        %v1711 = vsub.s32 %v1614, %v1710
        %v1712 = vrot.slane %v1644, %v1711
        %v1713 = vlaneseq
        %v1714 = vshrl.u32 %v1713, 7
        %v1715 = vsub.s32 %v1614, %v1714
        %v1716 = vrot.slane %v1647, %v1715
        %v1717 = vlaneseq
        %v1718 = vshrl.u32 %v1717, 7
        %v1719 = vsub.s32 %v1614, %v1718
        %v1720 = vrot.slane %v1650, %v1719
        %v1721 = vlaneseq
        %v1722 = vshrl.u32 %v1721, 7
        %v1723 = vsub.s32 %v1614, %v1722
        %v1724 = vrot.slane %v1653, %v1723
        %v1725 = vlaneseq
        %v1726 = vshrl.u32 %v1725, 7
        %v1727 = vsub.s32 %v1614, %v1726
        %v1728 = vrot.slane %v1656, %v1727
        %v1729 = vlaneseq
        %v1730 = vshrl.u32 %v1729, 7
        %v1731 = vsub.s32 %v1614, %v1730
        %v1732 = vrot.slane %v1659, %v1731
        %v1733 = vlaneseq
        %v1734 = vshrl.u32 %v1733, 7
        %v1735 = vsub.s32 %v1614, %v1734
        %v1736 = vrot.slane %v1662, %v1735
        %v1737 = vlaneseq
        %v1738 = vshrl.u32 %v1737, 7
        %v1739 = vsub.s32 %v1614, %v1738
        %v1740 = vrot.slane %v1665, %v1739
        %v1741 = vlaneseq
        %v1742 = vshrl.u32 %v1741, 7
        %v1743 = vsub.s32 %v1614, %v1742
        %v1744 = vrot.slane %v1668, %v1743
        %v1745 = vlaneseq
        %v1746 = vshrl.u32 %v1745, 7
        %v1747 = vsub.s32 %v1614, %v1746
        %v1748 = vrot.slane %v1671, %v1747
        %v1749 = vlaneseq
        %v1750 = vshrl.u32 %v1749, 7
        %v1751 = vsub.s32 %v1614, %v1750
        %v1752 = vrot.slane %v1674, %v1751
        %v1753 = vlaneseq
        %v1754 = vshrl.u32 %v1753, 7
        %v1755 = vsub.s32 %v1614, %v1754
        %v1756 = vrot.slane %v1677, %v1755
        %v1757 = vlaneseq
        %v1758 = vshrl.u32 %v1757, 7
        %v1759 = vsub.s32 %v1614, %v1758
        %v1760 = vrot.slane %v1680, %v1759
        %vm1761 = vcmask 1041409
        %v1762 = vsel %vm1761, %v1704, %v1700
        %vm1763 = vcmask 1042434
        %v1764 = vsel %vm1763, %v1708, %v1762
        %vm1765 = vcmask 1043459
        %v1766 = vsel %vm1765, %v1712, %v1764
        %vm1767 = vcmask 1044484
        %v1768 = vsel %vm1767, %v1716, %v1766
        %vm1769 = vcmask 1045509
        %v1770 = vsel %vm1769, %v1720, %v1768
        %vm1771 = vcmask 1046534
        %v1772 = vsel %vm1771, %v1724, %v1770
        %vm1773 = vcmask 1047559
        %v1774 = vsel %vm1773, %v1728, %v1772
        %v1775 = vsel %vm1761, %v1736, %v1732
        %v1776 = vsel %vm1763, %v1740, %v1775
        %v1777 = vsel %vm1765, %v1744, %v1776
        %v1778 = vsel %vm1767, %v1748, %v1777
        %v1779 = vsel %vm1769, %v1752, %v1778
        %v1780 = vsel %vm1771, %v1756, %v1779
        %v1781 = vsel %vm1773, %v1760, %v1780
        %vm1784 = vcmask 64512
        %1785 = vst.msk [vmem:[%s488] sm:$0xff] %vm1784, %v1774
        %1786 = vst.msk [vmem:[%s488 + $0x8] sm:$0xff] %vm1784, %v1781
        %vm1787 = vcmp.eq.s32.totalorder %v1614, 1
        %v1788 = vsel %vm1787, %v1551, 0.0
        %v1789 = vsel %vm1787, %v1554, 0.0
        %v1790 = vsel %vm1787, %v1559, 0.0
        %v1791 = vsel %vm1787, %v1562, 0.0
        %v1792 = vsel %vm1787, %v1567, 0.0
        %v1793 = vsel %vm1787, %v1570, 0.0
        %v1794 = vsel %vm1787, %v1575, 0.0
        %v1795 = vsel %vm1787, %v1578, 0.0
        %v1796 = vsel %vm1787, %v1583, 0.0
        %v1797 = vsel %vm1787, %v1586, 0.0
        %v1798 = vsel %vm1787, %v1591, 0.0
        %v1799 = vsel %vm1787, %v1594, 0.0
        %v1800 = vsel %vm1787, %v1599, 0.0
        %v1801 = vsel %vm1787, %v1602, 0.0
        %v1802 = vsel %vm1787, %v1607, 0.0
        %v1803 = vsel %vm1787, %v1610, 0.0
        %v1804 = vsel %vm1632, %v1788, 0.0
        %1805 = vadd.xlane.f32.xlu0 %v1804
        %v1806 = vpop.xlane.xlu0 %1805
        %v1807 = vsel %vm1632, %v1789, 0.0
        %1808 = vadd.xlane.f32.xlu0 %v1807
        %v1809 = vpop.xlane.xlu0 %1808
        %v1810 = vsel %vm1632, %v1790, 0.0
        %1811 = vadd.xlane.f32.xlu0 %v1810
        %v1812 = vpop.xlane.xlu0 %1811
        %v1813 = vsel %vm1632, %v1791, 0.0
        %1814 = vadd.xlane.f32.xlu0 %v1813
        %v1815 = vpop.xlane.xlu0 %1814
        %v1816 = vsel %vm1632, %v1792, 0.0
        %1817 = vadd.xlane.f32.xlu0 %v1816
        %v1818 = vpop.xlane.xlu0 %1817
        %v1819 = vsel %vm1632, %v1793, 0.0
        %1820 = vadd.xlane.f32.xlu0 %v1819
        %v1821 = vpop.xlane.xlu0 %1820
        %v1822 = vsel %vm1632, %v1794, 0.0
        %1823 = vadd.xlane.f32.xlu0 %v1822
        %v1824 = vpop.xlane.xlu0 %1823
        %v1825 = vsel %vm1632, %v1795, 0.0
        %1826 = vadd.xlane.f32.xlu0 %v1825
        %v1827 = vpop.xlane.xlu0 %1826
        %v1828 = vsel %vm1632, %v1796, 0.0
        %1829 = vadd.xlane.f32.xlu0 %v1828
        %v1830 = vpop.xlane.xlu0 %1829
        %v1831 = vsel %vm1632, %v1797, 0.0
        %1832 = vadd.xlane.f32.xlu0 %v1831
        %v1833 = vpop.xlane.xlu0 %1832
        %v1834 = vsel %vm1632, %v1798, 0.0
        %1835 = vadd.xlane.f32.xlu0 %v1834
        %v1836 = vpop.xlane.xlu0 %1835
        %v1837 = vsel %vm1632, %v1799, 0.0
        %1838 = vadd.xlane.f32.xlu0 %v1837
        %v1839 = vpop.xlane.xlu0 %1838
        %v1840 = vsel %vm1632, %v1800, 0.0
        %1841 = vadd.xlane.f32.xlu0 %v1840
        %v1842 = vpop.xlane.xlu0 %1841
        %v1843 = vsel %vm1632, %v1801, 0.0
        %1844 = vadd.xlane.f32.xlu0 %v1843
        %v1845 = vpop.xlane.xlu0 %1844
        %v1846 = vsel %vm1632, %v1802, 0.0
        %1847 = vadd.xlane.f32.xlu0 %v1846
        %v1848 = vpop.xlane.xlu0 %1847
        %v1849 = vsel %vm1632, %v1803, 0.0
        %1850 = vadd.xlane.f32.xlu0 %v1849
        %v1851 = vpop.xlane.xlu0 %1850
        %v1868 = vlaneseq
        %v1869 = vshrl.u32 %v1868, 7
        %v1870 = vsub.s32 %v1614, %v1869
        %v1871 = vrot.slane %v1806, %v1870
        %v1872 = vlaneseq
        %v1873 = vshrl.u32 %v1872, 7
        %v1874 = vsub.s32 %v1614, %v1873
        %v1875 = vrot.slane %v1809, %v1874
        %v1876 = vlaneseq
        %v1877 = vshrl.u32 %v1876, 7
        %v1878 = vsub.s32 %v1614, %v1877
        %v1879 = vrot.slane %v1812, %v1878
        %v1880 = vlaneseq
        %v1881 = vshrl.u32 %v1880, 7
        %v1882 = vsub.s32 %v1614, %v1881
        %v1883 = vrot.slane %v1815, %v1882
        %v1884 = vlaneseq
        %v1885 = vshrl.u32 %v1884, 7
        %v1886 = vsub.s32 %v1614, %v1885
        %v1887 = vrot.slane %v1818, %v1886
        %v1888 = vlaneseq
        %v1889 = vshrl.u32 %v1888, 7
        %v1890 = vsub.s32 %v1614, %v1889
        %v1891 = vrot.slane %v1821, %v1890
        %v1892 = vlaneseq
        %v1893 = vshrl.u32 %v1892, 7
        %v1894 = vsub.s32 %v1614, %v1893
        %v1895 = vrot.slane %v1824, %v1894
        %v1896 = vlaneseq
        %v1897 = vshrl.u32 %v1896, 7
        %v1898 = vsub.s32 %v1614, %v1897
        %v1899 = vrot.slane %v1827, %v1898
        %v1900 = vlaneseq
        %v1901 = vshrl.u32 %v1900, 7
        %v1902 = vsub.s32 %v1614, %v1901
        %v1903 = vrot.slane %v1830, %v1902
        %v1904 = vlaneseq
        %v1905 = vshrl.u32 %v1904, 7
        %v1906 = vsub.s32 %v1614, %v1905
        %v1907 = vrot.slane %v1833, %v1906
        %v1908 = vlaneseq
        %v1909 = vshrl.u32 %v1908, 7
        %v1910 = vsub.s32 %v1614, %v1909
        %v1911 = vrot.slane %v1836, %v1910
        %v1912 = vlaneseq
        %v1913 = vshrl.u32 %v1912, 7
        %v1914 = vsub.s32 %v1614, %v1913
        %v1915 = vrot.slane %v1839, %v1914
        %v1916 = vlaneseq
        %v1917 = vshrl.u32 %v1916, 7
        %v1918 = vsub.s32 %v1614, %v1917
        %v1919 = vrot.slane %v1842, %v1918
        %v1920 = vlaneseq
        %v1921 = vshrl.u32 %v1920, 7
        %v1922 = vsub.s32 %v1614, %v1921
        %v1923 = vrot.slane %v1845, %v1922
        %v1924 = vlaneseq
        %v1925 = vshrl.u32 %v1924, 7
        %v1926 = vsub.s32 %v1614, %v1925
        %v1927 = vrot.slane %v1848, %v1926
        %v1928 = vlaneseq
        %v1929 = vshrl.u32 %v1928, 7
        %v1930 = vsub.s32 %v1614, %v1929
        %v1931 = vrot.slane %v1851, %v1930
        %v1932 = vsel %vm1761, %v1875, %v1871
        %v1933 = vsel %vm1763, %v1879, %v1932
        %v1934 = vsel %vm1765, %v1883, %v1933
        %v1935 = vsel %vm1767, %v1887, %v1934
        %v1936 = vsel %vm1769, %v1891, %v1935
        %v1937 = vsel %vm1771, %v1895, %v1936
        %v1938 = vsel %vm1773, %v1899, %v1937
        %v1939 = vsel %vm1761, %v1907, %v1903
        %v1940 = vsel %vm1763, %v1911, %v1939
        %v1941 = vsel %vm1765, %v1915, %v1940
        %v1942 = vsel %vm1767, %v1919, %v1941
        %v1943 = vsel %vm1769, %v1923, %v1942
        %v1944 = vsel %vm1771, %v1927, %v1943
        %v1945 = vsel %vm1773, %v1931, %v1944
        %s1948 = scalar_lea.vmem %s488, 16 [#allocation14]
        %1949 = vst.msk [vmem:[%s1948] sm:$0xff] %vm1784, %v1938
        %1950 = vst.msk [vmem:[%s1948 + $0x8] sm:$0xff] %vm1784, %v1945
        %vm1951 = vcmp.eq.s32.totalorder %v1614, 2
        %v1952 = vsel %vm1951, %v1551, 0.0
        %v1953 = vsel %vm1951, %v1554, 0.0
        %v1954 = vsel %vm1951, %v1559, 0.0
        %v1955 = vsel %vm1951, %v1562, 0.0
        %v1956 = vsel %vm1951, %v1567, 0.0
        %v1957 = vsel %vm1951, %v1570, 0.0
        %v1958 = vsel %vm1951, %v1575, 0.0
        %v1959 = vsel %vm1951, %v1578, 0.0
        %v1960 = vsel %vm1951, %v1583, 0.0
        %v1961 = vsel %vm1951, %v1586, 0.0
        %v1962 = vsel %vm1951, %v1591, 0.0
        %v1963 = vsel %vm1951, %v1594, 0.0
        %v1964 = vsel %vm1951, %v1599, 0.0
        %v1965 = vsel %vm1951, %v1602, 0.0
        %v1966 = vsel %vm1951, %v1607, 0.0
        %v1967 = vsel %vm1951, %v1610, 0.0
        %v1968 = vsel %vm1632, %v1952, 0.0
        %1969 = vadd.xlane.f32.xlu0 %v1968
        %v1970 = vpop.xlane.xlu0 %1969
        %v1971 = vsel %vm1632, %v1953, 0.0
        %1972 = vadd.xlane.f32.xlu0 %v1971
        %v1973 = vpop.xlane.xlu0 %1972
        %v1974 = vsel %vm1632, %v1954, 0.0
        %1975 = vadd.xlane.f32.xlu0 %v1974
        %v1976 = vpop.xlane.xlu0 %1975
        %v1977 = vsel %vm1632, %v1955, 0.0
        %1978 = vadd.xlane.f32.xlu0 %v1977
        %v1979 = vpop.xlane.xlu0 %1978
        %v1980 = vsel %vm1632, %v1956, 0.0
        %1981 = vadd.xlane.f32.xlu0 %v1980
        %v1982 = vpop.xlane.xlu0 %1981
        %v1983 = vsel %vm1632, %v1957, 0.0
        %1984 = vadd.xlane.f32.xlu0 %v1983
        %v1985 = vpop.xlane.xlu0 %1984
        %v1986 = vsel %vm1632, %v1958, 0.0
        %1987 = vadd.xlane.f32.xlu0 %v1986
        %v1988 = vpop.xlane.xlu0 %1987
        %v1989 = vsel %vm1632, %v1959, 0.0
        %1990 = vadd.xlane.f32.xlu0 %v1989
        %v1991 = vpop.xlane.xlu0 %1990
        %v1992 = vsel %vm1632, %v1960, 0.0
        %1993 = vadd.xlane.f32.xlu0 %v1992
        %v1994 = vpop.xlane.xlu0 %1993
        %v1995 = vsel %vm1632, %v1961, 0.0
        %1996 = vadd.xlane.f32.xlu0 %v1995
        %v1997 = vpop.xlane.xlu0 %1996
        %v1998 = vsel %vm1632, %v1962, 0.0
        %1999 = vadd.xlane.f32.xlu0 %v1998
        %v2000 = vpop.xlane.xlu0 %1999
        %v2001 = vsel %vm1632, %v1963, 0.0
        %2002 = vadd.xlane.f32.xlu0 %v2001
        %v2003 = vpop.xlane.xlu0 %2002
        %v2004 = vsel %vm1632, %v1964, 0.0
        %2005 = vadd.xlane.f32.xlu0 %v2004
        %v2006 = vpop.xlane.xlu0 %2005
        %v2007 = vsel %vm1632, %v1965, 0.0
        %2008 = vadd.xlane.f32.xlu0 %v2007
        %v2009 = vpop.xlane.xlu0 %2008
        %v2010 = vsel %vm1632, %v1966, 0.0
        %2011 = vadd.xlane.f32.xlu0 %v2010
        %v2012 = vpop.xlane.xlu0 %2011
        %v2013 = vsel %vm1632, %v1967, 0.0
        %2014 = vadd.xlane.f32.xlu0 %v2013
        %v2015 = vpop.xlane.xlu0 %2014
        %v2032 = vlaneseq
        %v2033 = vshrl.u32 %v2032, 7
        %v2034 = vsub.s32 %v1614, %v2033
        %v2035 = vrot.slane %v1970, %v2034
        %v2036 = vlaneseq
        %v2037 = vshrl.u32 %v2036, 7
        %v2038 = vsub.s32 %v1614, %v2037
        %v2039 = vrot.slane %v1973, %v2038
        %v2040 = vlaneseq
        %v2041 = vshrl.u32 %v2040, 7
        %v2042 = vsub.s32 %v1614, %v2041
        %v2043 = vrot.slane %v1976, %v2042
        %v2044 = vlaneseq
        %v2045 = vshrl.u32 %v2044, 7
        %v2046 = vsub.s32 %v1614, %v2045
        %v2047 = vrot.slane %v1979, %v2046
        %v2048 = vlaneseq
        %v2049 = vshrl.u32 %v2048, 7
        %v2050 = vsub.s32 %v1614, %v2049
        %v2051 = vrot.slane %v1982, %v2050
        %v2052 = vlaneseq
        %v2053 = vshrl.u32 %v2052, 7
        %v2054 = vsub.s32 %v1614, %v2053
        %v2055 = vrot.slane %v1985, %v2054
        %v2056 = vlaneseq
        %v2057 = vshrl.u32 %v2056, 7
        %v2058 = vsub.s32 %v1614, %v2057
        %v2059 = vrot.slane %v1988, %v2058
        %v2060 = vlaneseq
        %v2061 = vshrl.u32 %v2060, 7
        %v2062 = vsub.s32 %v1614, %v2061
        %v2063 = vrot.slane %v1991, %v2062
        %v2064 = vlaneseq
        %v2065 = vshrl.u32 %v2064, 7
        %v2066 = vsub.s32 %v1614, %v2065
        %v2067 = vrot.slane %v1994, %v2066
        %v2068 = vlaneseq
        %v2069 = vshrl.u32 %v2068, 7
        %v2070 = vsub.s32 %v1614, %v2069
        %v2071 = vrot.slane %v1997, %v2070
        %v2072 = vlaneseq
        %v2073 = vshrl.u32 %v2072, 7
        %v2074 = vsub.s32 %v1614, %v2073
        %v2075 = vrot.slane %v2000, %v2074
        %v2076 = vlaneseq
        %v2077 = vshrl.u32 %v2076, 7
        %v2078 = vsub.s32 %v1614, %v2077
        %v2079 = vrot.slane %v2003, %v2078
        %v2080 = vlaneseq
        %v2081 = vshrl.u32 %v2080, 7
        %v2082 = vsub.s32 %v1614, %v2081
        %v2083 = vrot.slane %v2006, %v2082
        %v2084 = vlaneseq
        %v2085 = vshrl.u32 %v2084, 7
        %v2086 = vsub.s32 %v1614, %v2085
        %v2087 = vrot.slane %v2009, %v2086
        %v2088 = vlaneseq
        %v2089 = vshrl.u32 %v2088, 7
        %v2090 = vsub.s32 %v1614, %v2089
        %v2091 = vrot.slane %v2012, %v2090
        %v2092 = vlaneseq
        %v2093 = vshrl.u32 %v2092, 7
        %v2094 = vsub.s32 %v1614, %v2093
        %v2095 = vrot.slane %v2015, %v2094
        %v2096 = vsel %vm1761, %v2039, %v2035
        %v2097 = vsel %vm1763, %v2043, %v2096
        %v2098 = vsel %vm1765, %v2047, %v2097
        %v2099 = vsel %vm1767, %v2051, %v2098
        %v2100 = vsel %vm1769, %v2055, %v2099
        %v2101 = vsel %vm1771, %v2059, %v2100
        %v2102 = vsel %vm1773, %v2063, %v2101
        %v2103 = vsel %vm1761, %v2071, %v2067
        %v2104 = vsel %vm1763, %v2075, %v2103
        %v2105 = vsel %vm1765, %v2079, %v2104
        %v2106 = vsel %vm1767, %v2083, %v2105
        %v2107 = vsel %vm1769, %v2087, %v2106
        %v2108 = vsel %vm1771, %v2091, %v2107
        %v2109 = vsel %vm1773, %v2095, %v2108
        %s2112 = scalar_lea.vmem %s488, 32 [#allocation14]
        %2113 = vst.msk [vmem:[%s2112] sm:$0xff] %vm1784, %v2102
        %2114 = vst.msk [vmem:[%s2112 + $0x8] sm:$0xff] %vm1784, %v2109
        %s2115 = sand.u32 %s237, 1
        %s2116 = scalar_lea.sflag [#allocation4], %s2115
        %s2117 = sand.u32 %s237, 1
        %s2118 = smul.addr %s2117, 48
        %s2119 = scalar_lea.vmem [#allocation14], %s2118
        // Predicated region
        $region77: #{scorer_forward.1} parent=47 // pred_check
          %p2120 = pneg %p247
        $region78: #{scorer_forward.1} parent=47 // pred_check_branch
          %2122 = sbr.rel (%p2120) target = $region80
        $region79: #{scorer_forward.1} parent=47 // pred_region
          #allocation16 [shape = 'u32[6]{0}', space=smem, size = 0x18, scoped, tag = 'DMA stride descriptor']
          %s2123 = smul.u32 2, %s37
          %s2125 = ssub.s32 768, 768
          %2126 = vsyncadd %s2116, %s2125
          %s2127 = sadd.s32 %s38, %s2123
          %s2128 = smul.addr %s36, 2
          %s2129 = sadd.s32 %s2127, %s2128
          %s2130 = smul.addr %s2129, 128
          %s2131 = scalar_lea.hbm %s7, %s2130
          %s2133 = sshll.u32 1, 14
          %s2134 = sxor.u32 4294967295, %s2133
          %s2137 = sshll.u32 7, 18
          %s2138 = sxor.u32 4294967295, %s2137
          %s2139 = sand.u32 0, %s2138
          %s2141 = sor.u32 %s2139, 0
          %s2143 = sshll.u32 3, 24
          %s2144 = sxor.u32 4294967295, %s2143
          %s2145 = sand.u32 %s2141, %s2144
          %s2147 = sor.u32 %s2145, 0
          %s2148 = sshll.u32 %s2119, 4
          %s2149 = int_to_ptr.vmem [resolvable:$true] %s2148
          %2155 = sst [smem:[#allocation16]] 256
          %s2156 = scalar_lea.smem [#allocation16], 1
          %2157 = sst [smem:[%s2156]] 512
          %s2158 = scalar_lea.smem [#allocation16], 2
          %2159 = sst [smem:[%s2158]] 2
          %s2160 = scalar_lea.smem [#allocation16], 3
          %2161 = sst [smem:[%s2160]] 128
          %s2162 = scalar_lea.smem [#allocation16], 4
          %2163 = sst [smem:[%s2162]] 128
          %s2164 = scalar_lea.smem [#allocation16], 5
          %2165 = sst [smem:[%s2164]] 8
          %2167 = dma.general %s2149, 768, %s2131, %s2116, [#allocation15], [#allocation16], %s2147, 0
        $region80: #{scorer_forward.1} parent=47 // pred_fallthru
          _
      $region48: #{scorer_forward.1} parent=5 // pred_fallthru
        _
      %p2168 = scmp.le.s32.totalorder 2, %s26
      // Predicated region
      $region81: #{scorer_forward.1} parent=5 // pred_check
        %p2169 = pneg %p2168
      $region82: #{scorer_forward.1} parent=5 // pred_check_branch
        %2171 = sbr.rel (%p2169) target = $region84
      $region83: #{scorer_forward.1} parent=5 // pred_region
        %s2172 = ssub.s32 %s26, 2
        // Predicated region
        $region85: #{scorer_forward.1} parent=83 // pred_check
          %p2173 = pneg %p253
        $region86: #{scorer_forward.1} parent=83 // pred_check_branch
          %2175 = sbr.rel (%p2173) target = $region88
        $region87: #{scorer_forward.1} parent=83 // pred_region
          %s2176 = sand.u32 %s238, 1
          %s2177 = scalar_lea.sflag [#allocation4], %s2176
          %s2178 = sand.u32 %s238, 1
          %s2179 = smul.addr %s2178, 48
          %s2180 = scalar_lea.vmem [#allocation14], %s2179
          %2181 = dma.done %s2177, 768
        $region88: #{scorer_forward.1} parent=83 // pred_fallthru
          _
      $region84: #{scorer_forward.1} parent=5 // pred_fallthru
        _
    $region6: #{scorer_forward.1} parent=1 // loop_footer
      %s30 = sadd.s32 1, %s26
    $region7: #{scorer_forward.1} parent=1 // loop_footer_branch
      %25 = sbr.rel target = $region3
    $region8: #{scorer_forward.1} parent=1 // loop_exit
      _
    %2182 = vsyncpa [#allocation3], 1
    %s2183 = scalar_lea.sflag [#allocation3], 1
    %2184 = vsyncpa %s2183, 1
    %2185 = vsyncpa [#allocation6], 1
    %s2186 = scalar_lea.sflag [#allocation6], 1
    %2187 = vsyncpa %s2186, 1
    %2188 = vsyncpa [#allocation9], 1
    %s2189 = scalar_lea.sflag [#allocation9], 1
    %2190 = vsyncpa %s2189, 1
    %2191 = vsyncpa [#allocation12], 1
    %2192 = vsyncpa [#allocation4], 1
    %s2193 = scalar_lea.sflag [#allocation4], 1
    %2194 = vsyncpa %s2193, 1

</llo_original>
